<compile_context>
chip_gen: v5e
topology: v5e:2x2
jax: 0.10.0
libtpu: 0.0.40
codegen_flags: <defaults>
</compile_context>

<pallas_src>
import jax
import jax.numpy as jnp
import numpy as np
from jax import lax
from jax.experimental import pallas as pl
from jax.experimental.pallas import tpu as pltpu

K = 3
STRIDE = 2
PADDING = 1

# (output parity, input row/col shift) -> contributing kernel spatial index on
# that axis; pairs not listed contribute nothing.  Derived from
# oy = 2*iy - PADDING + kh  (stride 2, padding 1, kernel 3).
_TAP = {(0, 0): 1, (1, 0): 2, (1, 1): 0}


def _convt_row_kernel(x_ref, h_ref, w_ref, d_ref, b_ref, o_ref):
    """One (batch, row-band) grid step.

    x_ref: (1, Cin, 1, TH, W)      input rows of this band
    h_ref: (1, Cin, 1, 1, W)       halo row (first row of next band / zeros)
    w_ref: (2, 8*Cout, Cin)        fused tap weights; leading index = dr,
                                   rows = (pr, pc, dc, co), cols = ci
    d_ref: (4, W, 2*W)             0/1 column dilation/interleave matrices,
                                   index = dc*2 + pc (exact, f32)
    b_ref: (Cout, 1)               f32 bias
    o_ref: (1, Cout, 1, 2*TH, 2*W) final-layout output rows of this band
    """
    _, cin, _, th, w = x_ref.shape
    cout = o_ref.shape[1]

    w_lo = w_ref[0]                       # (8*Cout, Cin): dr = 0 taps
    w_hi = w_ref[1]                       # (8*Cout, Cin): dr = 1 taps
    bias = b_ref[...]                     # (Cout, 1), f32
    dmats = [d_ref[i] for i in range(4)]  # each (W, 2*W), f32

    for r in range(th):
        x_lo = x_ref[0, :, 0, r, :]                       # (Cin, W)
        if r + 1 < th:
            x_hi = x_ref[0, :, 0, r + 1, :]               # next row in band
        else:
            x_hi = h_ref[0, :, 0, 0, :]                   # halo row
        # Stage 1: all (pr, pc, dc, co) tap combinations in one fused matmul
        # pair; rows of y = (pr, pc, dc, co), lanes = input columns.
        y = (lax.dot_general(w_lo, x_lo, (((1,), (0,)), ((), ())),
                             preferred_element_type=jnp.float32)
             + lax.dot_general(w_hi, x_hi, (((1,), (0,)), ((), ())),
                               preferred_element_type=jnp.float32))
        # Stage 2: exact 0/1 dilation matmuls route input column j to output
        # column 2*(j - dc) + pc, i.e. the sub-pixel column interleave happens
        # on the MXU; the row (pr) interleave happens in the store index.
        for pr in (0, 1):
            z = bias
            for pc in (0, 1):
                for dc in (0, 1):
                    if _TAP.get((pc, dc)) is None:
                        continue          # (pc=0, dc=1) has no tap
                    row0 = ((pr * 2 + pc) * 2 + dc) * cout
                    ysl = y[row0:row0 + cout, :]          # (Cout, W)
                    z = z + jnp.dot(ysl, dmats[dc * 2 + pc],
                                    preferred_element_type=jnp.float32)
            o_ref[0, :, 0, 2 * r + pr, :] = z.astype(o_ref.dtype)


def _prepare_constants(weight, bias, width, param_dtype):
    """Fused tap-weight matrix, 0/1 column-interleave matrices and bias.

    Pure function of the layer parameters (+ the input width) -- cacheable per
    layer and constant-folded under jit (review item: hoist weight prep)."""
    cin, cout, kh, kw = weight.shape
    assert (kh, kw) == (K, K)
    w_hwio = jnp.transpose(weight, (2, 3, 0, 1)).astype(param_dtype)  # (3,3,Ci,Co)

    wmat = jnp.zeros((2, 8 * cout, cin), param_dtype)
    for pr in (0, 1):
        for dr in (0, 1):
            khi = _TAP.get((pr, dr))
            if khi is None:
                continue
            for pc in (0, 1):
                for dc in (0, 1):
                    kwi = _TAP.get((pc, dc))
                    if kwi is None:
                        continue
                    row0 = ((pr * 2 + pc) * 2 + dc) * cout
                    wmat = wmat.at[dr, row0:row0 + cout, :].set(
                        w_hwio[khi, kwi].T)               # (Cout, Cin)

    d_np = np.zeros((4, width, 2 * width), np.float32)
    for dc in (0, 1):
        for pc in (0, 1):
            for jc in range(width):
                ox = 2 * (jc - dc) + pc
                if 0 <= ox < 2 * width:
                    d_np[dc * 2 + pc, jc, ox] = 1.0
    dmat = jnp.asarray(d_np)
    b_col = bias.astype(jnp.float32).reshape(cout, 1)
    return wmat, dmat, b_col


def _pick_row_tile(n, h, w, cin, cout, in_itemsize, out_itemsize,
                   budget_bytes=8 * 1024 * 1024, max_unroll=32, min_steps=8):
    """Largest divisor of H whose double-buffered block footprint (including
    the weight / dilation / bias blocks) fits the VMEM budget and, when
    possible, still yields >= min_steps grid steps (v7x: 2 TCs x 2-deep
    pipeline).  Budget stays well below every generation's scoped default."""
    const_bytes = (2 * 8 * cout * cin * 4) + (4 * w * 2 * w * 4) + cout * 4

    def footprint(th):
        x_blk = cin * th * w * in_itemsize
        h_blk = cin * w * in_itemsize
        o_blk = cout * (2 * th) * (2 * w) * out_itemsize
        return 2 * (x_blk + h_blk + o_blk) + 2 * const_bytes

    divisors = [d for d in range(1, min(h, max_unroll) + 1) if h % d == 0]
    fitting = [d for d in divisors if footprint(d) <= budget_bytes] or [1]
    good = [d for d in fitting if n * (h // d) >= min_steps]
    return max(good) if good else max(fitting)


def conv_transpose_block(x, weight, bias, *, output_padding, out_dtype=None):
    """Forward of ConvTransposeBlock.

    x: (N, Cin, H, W); weight: (Cin, Cout, 3, 3) (PyTorch ConvTranspose2d
    layout); bias: (Cout,).  Returns (N, Cout, Ho, Wo).
    out_dtype: optional output dtype (e.g. jnp.bfloat16) -- halves the
    dominant HBM output stream; accumulation stays f32.
    """
    n, cin, h, w = x.shape
    cin_w, cout = weight.shape[:2]
    assert cin_w == cin
    assert 0 <= output_padding < STRIDE
    out_dtype = x.dtype if out_dtype is None else out_dtype

    ho = (h - 1) * STRIDE - 2 * PADDING + K + output_padding
    wo = (w - 1) * STRIDE - 2 * PADDING + K + output_padding

    wmat, dmat, b_col = _prepare_constants(weight, bias, w, x.dtype)

    th = _pick_row_tile(n, h, w, cin, cout,
                        jnp.dtype(x.dtype).itemsize,
                        jnp.dtype(out_dtype).itemsize)
    nb = h // th

    # Zero-copy reshape of x into row bands; tiny halo array holding the first
    # row of the next band (zeros for the last band).  No im2col, no pads.
    x5 = x.reshape(n, cin, nb, th, w)
    if nb > 1:
        halo = jnp.concatenate(
            [x[:, :, th::th, :], jnp.zeros((n, cin, 1, w), x.dtype)], axis=2)
    else:
        halo = jnp.zeros((n, cin, 1, w), x.dtype)
    halo = halo.reshape(n, cin, nb, 1, w)

    flops = 2 * n * h * (16 * cout * cin * w + 12 * cout * w * w)
    bytes_accessed = (x5.size * x5.dtype.itemsize
                      + halo.size * halo.dtype.itemsize
                      + wmat.size * wmat.dtype.itemsize
                      + dmat.size * 4 + b_col.size * 4
                      + n * cout * 4 * h * w * jnp.dtype(out_dtype).itemsize)

    out5 = pl.pallas_call(
        _convt_row_kernel,
        out_shape=jax.ShapeDtypeStruct((n, cout, nb, 2 * th, 2 * w), out_dtype),
        grid=(n, nb),
        in_specs=[
            pl.BlockSpec((1, cin, 1, th, w), lambda b, t: (b, 0, t, 0, 0)),
            pl.BlockSpec((1, cin, 1, 1, w), lambda b, t: (b, 0, t, 0, 0)),
            pl.BlockSpec((2, 8 * cout, cin), lambda b, t: (0, 0, 0)),
            pl.BlockSpec((4, w, 2 * w), lambda b, t: (0, 0, 0)),
            pl.BlockSpec((cout, 1), lambda b, t: (0, 0)),
        ],
        out_specs=pl.BlockSpec((1, cout, 1, 2 * th, 2 * w),
                               lambda b, t: (b, 0, t, 0, 0)),
        compiler_params=pltpu.CompilerParams(
            dimension_semantics=("parallel", "parallel")),
        cost_estimate=pl.CostEstimate(flops=flops, transcendentals=0,
                                      bytes_accessed=bytes_accessed),
    )(x5, halo, wmat, dmat, b_col)

    # Zero-copy reshape back to the final NCHW layout (no depth-to-space pass);
    # crop only for output_padding == 0.
    y = out5.reshape(n, cout, 2 * h, 2 * w)
    if output_padding == 0:
        y = y[:, :, :ho, :wo]
    return y


def _reference(x, weight, bias, output_padding):
    # Pure-JAX reference for ConvTranspose2d via lhs-dilated conv.
    w_oihw = jnp.transpose(weight, (1, 0, 2, 3))[:, :, ::-1, ::-1]
    pad = [(K - 1 - PADDING, K - 1 - PADDING + output_padding)] * 2
    y = lax.conv_general_dilated(
        x, w_oihw, window_strides=(1, 1), padding=pad,
        lhs_dilation=(STRIDE, STRIDE),
        dimension_numbers=("NCHW", "OIHW", "NCHW"))
    return y + bias[None, :, None, None]


if __name__ == "__main__":
    # Module config (small, consistent with the forward pass).
    N, Cin, Cout, H, W = 2, 4, 8, 16, 16
    output_padding = 1

    key = jax.random.PRNGKey(0)
    kx, kw, kb = jax.random.split(key, 3)
    x = jax.random.normal(kx, (N, Cin, H, W), jnp.float32)
    # nn.ConvTranspose2d weight shape: (in_channels, out_channels, kH, kW)
    weight = jax.random.normal(kw, (Cin, Cout, K, K), jnp.float32) * 0.1
    bias = jax.random.normal(kb, (Cout,), jnp.float32) * 0.1

    fwd = jax.jit(conv_transpose_block,
                  static_argnames=("output_padding", "out_dtype"))

    # f32 path, output_padding = 1 (module config).
    ref = _reference(x, weight, bias, output_padding)
    out = jax.block_until_ready(fwd(x, weight, bias,
                                    output_padding=output_padding))
    assert out.shape == (N, Cout, 2 * H, 2 * W), out.shape
    assert jnp.allclose(out, ref, atol=1e-4, rtol=1e-4), "f32 mismatch"

    # bf16-output fast path (halves the dominant HBM output stream).
    out_bf16 = jax.block_until_ready(
        fwd(x, weight, bias, output_padding=output_padding,
            out_dtype=jnp.bfloat16))
    assert out_bf16.dtype == jnp.bfloat16
    assert jnp.allclose(out_bf16.astype(jnp.float32), ref,
                        atol=5e-2, rtol=5e-2), "bf16 mismatch"

    # output_padding = 0 variant (crops the trailing output row/column).
    ref0 = _reference(x, weight, bias, 0)
    out0 = jax.block_until_ready(fwd(x, weight, bias, output_padding=0))
    assert out0.shape == (N, Cout, 2 * H - 1, 2 * W - 1), out0.shape
    assert jnp.allclose(out0, ref0, atol=1e-4, rtol=1e-4), "op=0 mismatch"

    print("KERNEL_OK")
</pallas_src>

<mosaic_0001>
module attributes {stable_mosaic.version = 11 : i64} {
  func.func @_convt_row_kernel(%arg0: i32, %arg1: i32, %arg2: memref<1x4x1x4x16xf32, #tpu.memory_space<vmem>>, %arg3: memref<1x4x1x1x16xf32, #tpu.memory_space<vmem>>, %arg4: memref<2x64x4xf32, #tpu.memory_space<vmem>>, %arg5: memref<4x16x32xf32, #tpu.memory_space<vmem>>, %arg6: memref<8x1xf32, #tpu.memory_space<vmem>>, %arg7: memref<1x8x1x8x32xf32, #tpu.memory_space<vmem>>) attributes {dimension_semantics = [#tpu.dimension_semantics<parallel>, #tpu.dimension_semantics<parallel>], iteration_bounds = array<i64: 2, 4>, scalar_prefetch = 0 : i64, scratch_operands = 0 : i64, tpu.core_type = #tpu.core_type<tc>, window_params = [{transform_indices = @transform_0, window_bounds = array<i64: 1, 4, 1, 4, 16>}, {transform_indices = @transform_1, window_bounds = array<i64: 1, 4, 1, 1, 16>}, {pipeline_mode = #tpu.pipeline_mode<synchronous>, transform_indices = @transform_2, window_bounds = array<i64: 2, 64, 4>}, {pipeline_mode = #tpu.pipeline_mode<synchronous>, transform_indices = @transform_3, window_bounds = array<i64: 4, 16, 32>}, {pipeline_mode = #tpu.pipeline_mode<synchronous>, transform_indices = @transform_4, window_bounds = array<i64: 8, 1>}, {transform_indices = @transform_5, window_bounds = array<i64: 1, 8, 1, 8, 32>}]} {
    %c0 = arith.constant 0 : index
    %c0_0 = arith.constant 0 : index
    %c0_1 = arith.constant 0 : index
    %0 = vector.load %arg4[%c0, %c0_0, %c0_1] : memref<2x64x4xf32, #tpu.memory_space<vmem>>, vector<1x64x4xf32>
    %1 = vector.shape_cast %0 : vector<1x64x4xf32> to vector<64x4xf32>
    %c1 = arith.constant 1 : index
    %c0_2 = arith.constant 0 : index
    %c0_3 = arith.constant 0 : index
    %2 = vector.load %arg4[%c1, %c0_2, %c0_3] : memref<2x64x4xf32, #tpu.memory_space<vmem>>, vector<1x64x4xf32>
    %3 = vector.shape_cast %2 : vector<1x64x4xf32> to vector<64x4xf32>
    %c0_4 = arith.constant 0 : index
    %c0_5 = arith.constant 0 : index
    %4 = vector.load %arg6[%c0_4, %c0_5] : memref<8x1xf32, #tpu.memory_space<vmem>>, vector<8x1xf32>
    %c0_6 = arith.constant 0 : index
    %c0_7 = arith.constant 0 : index
    %c0_8 = arith.constant 0 : index
    %5 = vector.load %arg5[%c0_6, %c0_7, %c0_8] : memref<4x16x32xf32, #tpu.memory_space<vmem>>, vector<1x16x32xf32>
    %6 = vector.shape_cast %5 : vector<1x16x32xf32> to vector<16x32xf32>
    %c1_9 = arith.constant 1 : index
    %c0_10 = arith.constant 0 : index
    %c0_11 = arith.constant 0 : index
    %7 = vector.load %arg5[%c1_9, %c0_10, %c0_11] : memref<4x16x32xf32, #tpu.memory_space<vmem>>, vector<1x16x32xf32>
    %8 = vector.shape_cast %7 : vector<1x16x32xf32> to vector<16x32xf32>
    %c3 = arith.constant 3 : index
    %c0_12 = arith.constant 0 : index
    %c0_13 = arith.constant 0 : index
    %9 = vector.load %arg5[%c3, %c0_12, %c0_13] : memref<4x16x32xf32, #tpu.memory_space<vmem>>, vector<1x16x32xf32>
    %10 = vector.shape_cast %9 : vector<1x16x32xf32> to vector<16x32xf32>
    %c0_14 = arith.constant 0 : index
    %c0_15 = arith.constant 0 : index
    %c0_16 = arith.constant 0 : index
    %c0_17 = arith.constant 0 : index
    %c0_18 = arith.constant 0 : index
    %11 = vector.load %arg2[%c0_14, %c0_15, %c0_16, %c0_17, %c0_18] : memref<1x4x1x4x16xf32, #tpu.memory_space<vmem>>, vector<1x4x1x1x16xf32>
    %12 = vector.shape_cast %11 : vector<1x4x1x1x16xf32> to vector<4x16xf32>
    %c0_19 = arith.constant 0 : index
    %c0_20 = arith.constant 0 : index
    %c0_21 = arith.constant 0 : index
    %c1_22 = arith.constant 1 : index
    %c0_23 = arith.constant 0 : index
    %13 = vector.load %arg2[%c0_19, %c0_20, %c0_21, %c1_22, %c0_23] : memref<1x4x1x4x16xf32, #tpu.memory_space<vmem>>, vector<1x4x1x1x16xf32>
    %14 = vector.shape_cast %13 : vector<1x4x1x1x16xf32> to vector<4x16xf32>
    %cst = arith.constant dense<0.000000e+00> : vector<64x16xf32>
    %15 = tpu.matmul %1, %12, %cst {dimension_numbers = #tpu.dot_dimension_numbers<[1], [0], [0], [1], [0, 0, 1, 1], [], []>} : vector<64x4xf32>, vector<4x16xf32>, vector<64x16xf32> -> vector<64x16xf32>
    %cst_24 = arith.constant dense<0.000000e+00> : vector<64x16xf32>
    %16 = tpu.matmul %3, %14, %cst_24 {dimension_numbers = #tpu.dot_dimension_numbers<[1], [0], [0], [1], [0, 0, 1, 1], [], []>} : vector<64x4xf32>, vector<4x16xf32>, vector<64x16xf32> -> vector<64x16xf32>
    %17 = arith.addf %15, %16 : vector<64x16xf32>
    %18 = vector.extract_strided_slice %17 {offsets = [0, 0], sizes = [8, 16], strides = [1, 1]} : vector<64x16xf32> to vector<8x16xf32>
    %cst_25 = arith.constant dense<0.000000e+00> : vector<8x32xf32>
    %19 = tpu.matmul %18, %6, %cst_25 {dimension_numbers = #tpu.dot_dimension_numbers<[1], [0], [0], [1], [0, 0, 1, 1], [], []>} : vector<8x16xf32>, vector<16x32xf32>, vector<8x32xf32> -> vector<8x32xf32>
    %20 = vector.broadcast %4 : vector<8x1xf32> to vector<8x32xf32>
    %21 = arith.addf %20, %19 : vector<8x32xf32>
    %22 = vector.extract_strided_slice %17 {offsets = [16, 0], sizes = [8, 16], strides = [1, 1]} : vector<64x16xf32> to vector<8x16xf32>
    %cst_26 = arith.constant dense<0.000000e+00> : vector<8x32xf32>
    %23 = tpu.matmul %22, %8, %cst_26 {dimension_numbers = #tpu.dot_dimension_numbers<[1], [0], [0], [1], [0, 0, 1, 1], [], []>} : vector<8x16xf32>, vector<16x32xf32>, vector<8x32xf32> -> vector<8x32xf32>
    %24 = arith.addf %21, %23 : vector<8x32xf32>
    %25 = vector.extract_strided_slice %17 {offsets = [24, 0], sizes = [8, 16], strides = [1, 1]} : vector<64x16xf32> to vector<8x16xf32>
    %cst_27 = arith.constant dense<0.000000e+00> : vector<8x32xf32>
    %26 = tpu.matmul %25, %10, %cst_27 {dimension_numbers = #tpu.dot_dimension_numbers<[1], [0], [0], [1], [0, 0, 1, 1], [], []>} : vector<8x16xf32>, vector<16x32xf32>, vector<8x32xf32> -> vector<8x32xf32>
    %27 = arith.addf %24, %26 : vector<8x32xf32>
    %c0_28 = arith.constant 0 : index
    %c0_29 = arith.constant 0 : index
    %c0_30 = arith.constant 0 : index
    %c0_31 = arith.constant 0 : index
    %c0_32 = arith.constant 0 : index
    %28 = vector.load %arg7[%c0_28, %c0_29, %c0_30, %c0_31, %c0_32] : memref<1x8x1x8x32xf32, #tpu.memory_space<vmem>>, vector<1x8x1x1x32xf32>
    %29 = vector.shape_cast %28 : vector<1x8x1x1x32xf32> to vector<8x32xf32>
    %30 = vector.shape_cast %27 : vector<8x32xf32> to vector<1x8x1x1x32xf32>
    tpu.vector_store %arg7[%c0_28, %c0_29, %c0_30, %c0_31, %c0_32], %30 {strides = array<i32>} : memref<1x8x1x8x32xf32, #tpu.memory_space<vmem>>, vector<1x8x1x1x32xf32>,
    %31 = vector.extract_strided_slice %17 {offsets = [32, 0], sizes = [8, 16], strides = [1, 1]} : vector<64x16xf32> to vector<8x16xf32>
    %cst_33 = arith.constant dense<0.000000e+00> : vector<8x32xf32>
    %32 = tpu.matmul %31, %6, %cst_33 {dimension_numbers = #tpu.dot_dimension_numbers<[1], [0], [0], [1], [0, 0, 1, 1], [], []>} : vector<8x16xf32>, vector<16x32xf32>, vector<8x32xf32> -> vector<8x32xf32>
    %33 = vector.broadcast %4 : vector<8x1xf32> to vector<8x32xf32>
    %34 = arith.addf %33, %32 : vector<8x32xf32>
    %35 = vector.extract_strided_slice %17 {offsets = [48, 0], sizes = [8, 16], strides = [1, 1]} : vector<64x16xf32> to vector<8x16xf32>
    %cst_34 = arith.constant dense<0.000000e+00> : vector<8x32xf32>
    %36 = tpu.matmul %35, %8, %cst_34 {dimension_numbers = #tpu.dot_dimension_numbers<[1], [0], [0], [1], [0, 0, 1, 1], [], []>} : vector<8x16xf32>, vector<16x32xf32>, vector<8x32xf32> -> vector<8x32xf32>
    %37 = arith.addf %34, %36 : vector<8x32xf32>
    %38 = vector.extract_strided_slice %17 {offsets = [56, 0], sizes = [8, 16], strides = [1, 1]} : vector<64x16xf32> to vector<8x16xf32>
    %cst_35 = arith.constant dense<0.000000e+00> : vector<8x32xf32>
    %39 = tpu.matmul %38, %10, %cst_35 {dimension_numbers = #tpu.dot_dimension_numbers<[1], [0], [0], [1], [0, 0, 1, 1], [], []>} : vector<8x16xf32>, vector<16x32xf32>, vector<8x32xf32> -> vector<8x32xf32>
    %40 = arith.addf %37, %39 : vector<8x32xf32>
    %c0_36 = arith.constant 0 : index
    %c0_37 = arith.constant 0 : index
    %c0_38 = arith.constant 0 : index
    %c1_39 = arith.constant 1 : index
    %c0_40 = arith.constant 0 : index
    %41 = vector.load %arg7[%c0_36, %c0_37, %c0_38, %c1_39, %c0_40] : memref<1x8x1x8x32xf32, #tpu.memory_space<vmem>>, vector<1x8x1x1x32xf32>
    %42 = vector.shape_cast %41 : vector<1x8x1x1x32xf32> to vector<8x32xf32>
    %43 = vector.shape_cast %40 : vector<8x32xf32> to vector<1x8x1x1x32xf32>
    tpu.vector_store %arg7[%c0_36, %c0_37, %c0_38, %c1_39, %c0_40], %43 {strides = array<i32>} : memref<1x8x1x8x32xf32, #tpu.memory_space<vmem>>, vector<1x8x1x1x32xf32>,
    %c0_41 = arith.constant 0 : index
    %c0_42 = arith.constant 0 : index
    %c0_43 = arith.constant 0 : index
    %c1_44 = arith.constant 1 : index
    %c0_45 = arith.constant 0 : index
    %44 = vector.load %arg2[%c0_41, %c0_42, %c0_43, %c1_44, %c0_45] : memref<1x4x1x4x16xf32, #tpu.memory_space<vmem>>, vector<1x4x1x1x16xf32>
    %45 = vector.shape_cast %44 : vector<1x4x1x1x16xf32> to vector<4x16xf32>
    %c0_46 = arith.constant 0 : index
    %c0_47 = arith.constant 0 : index
    %c0_48 = arith.constant 0 : index
    %c2 = arith.constant 2 : index
    %c0_49 = arith.constant 0 : index
    %46 = vector.load %arg2[%c0_46, %c0_47, %c0_48, %c2, %c0_49] : memref<1x4x1x4x16xf32, #tpu.memory_space<vmem>>, vector<1x4x1x1x16xf32>
    %47 = vector.shape_cast %46 : vector<1x4x1x1x16xf32> to vector<4x16xf32>
    %cst_50 = arith.constant dense<0.000000e+00> : vector<64x16xf32>
    %48 = tpu.matmul %1, %45, %cst_50 {dimension_numbers = #tpu.dot_dimension_numbers<[1], [0], [0], [1], [0, 0, 1, 1], [], []>} : vector<64x4xf32>, vector<4x16xf32>, vector<64x16xf32> -> vector<64x16xf32>
    %cst_51 = arith.constant dense<0.000000e+00> : vector<64x16xf32>
    %49 = tpu.matmul %3, %47, %cst_51 {dimension_numbers = #tpu.dot_dimension_numbers<[1], [0], [0], [1], [0, 0, 1, 1], [], []>} : vector<64x4xf32>, vector<4x16xf32>, vector<64x16xf32> -> vector<64x16xf32>
    %50 = arith.addf %48, %49 : vector<64x16xf32>
    %51 = vector.extract_strided_slice %50 {offsets = [0, 0], sizes = [8, 16], strides = [1, 1]} : vector<64x16xf32> to vector<8x16xf32>
    %cst_52 = arith.constant dense<0.000000e+00> : vector<8x32xf32>
    %52 = tpu.matmul %51, %6, %cst_52 {dimension_numbers = #tpu.dot_dimension_numbers<[1], [0], [0], [1], [0, 0, 1, 1], [], []>} : vector<8x16xf32>, vector<16x32xf32>, vector<8x32xf32> -> vector<8x32xf32>
    %53 = vector.broadcast %4 : vector<8x1xf32> to vector<8x32xf32>
    %54 = arith.addf %53, %52 : vector<8x32xf32>
    %55 = vector.extract_strided_slice %50 {offsets = [16, 0], sizes = [8, 16], strides = [1, 1]} : vector<64x16xf32> to vector<8x16xf32>
    %cst_53 = arith.constant dense<0.000000e+00> : vector<8x32xf32>
    %56 = tpu.matmul %55, %8, %cst_53 {dimension_numbers = #tpu.dot_dimension_numbers<[1], [0], [0], [1], [0, 0, 1, 1], [], []>} : vector<8x16xf32>, vector<16x32xf32>, vector<8x32xf32> -> vector<8x32xf32>
    %57 = arith.addf %54, %56 : vector<8x32xf32>
    %58 = vector.extract_strided_slice %50 {offsets = [24, 0], sizes = [8, 16], strides = [1, 1]} : vector<64x16xf32> to vector<8x16xf32>
    %cst_54 = arith.constant dense<0.000000e+00> : vector<8x32xf32>
    %59 = tpu.matmul %58, %10, %cst_54 {dimension_numbers = #tpu.dot_dimension_numbers<[1], [0], [0], [1], [0, 0, 1, 1], [], []>} : vector<8x16xf32>, vector<16x32xf32>, vector<8x32xf32> -> vector<8x32xf32>
    %60 = arith.addf %57, %59 : vector<8x32xf32>
    %c0_55 = arith.constant 0 : index
    %c0_56 = arith.constant 0 : index
    %c0_57 = arith.constant 0 : index
    %c2_58 = arith.constant 2 : index
    %c0_59 = arith.constant 0 : index
    %61 = vector.load %arg7[%c0_55, %c0_56, %c0_57, %c2_58, %c0_59] : memref<1x8x1x8x32xf32, #tpu.memory_space<vmem>>, vector<1x8x1x1x32xf32>
    %62 = vector.shape_cast %61 : vector<1x8x1x1x32xf32> to vector<8x32xf32>
    %63 = vector.shape_cast %60 : vector<8x32xf32> to vector<1x8x1x1x32xf32>
    tpu.vector_store %arg7[%c0_55, %c0_56, %c0_57, %c2_58, %c0_59], %63 {strides = array<i32>} : memref<1x8x1x8x32xf32, #tpu.memory_space<vmem>>, vector<1x8x1x1x32xf32>,
    %64 = vector.extract_strided_slice %50 {offsets = [32, 0], sizes = [8, 16], strides = [1, 1]} : vector<64x16xf32> to vector<8x16xf32>
    %cst_60 = arith.constant dense<0.000000e+00> : vector<8x32xf32>
    %65 = tpu.matmul %64, %6, %cst_60 {dimension_numbers = #tpu.dot_dimension_numbers<[1], [0], [0], [1], [0, 0, 1, 1], [], []>} : vector<8x16xf32>, vector<16x32xf32>, vector<8x32xf32> -> vector<8x32xf32>
    %66 = vector.broadcast %4 : vector<8x1xf32> to vector<8x32xf32>
    %67 = arith.addf %66, %65 : vector<8x32xf32>
    %68 = vector.extract_strided_slice %50 {offsets = [48, 0], sizes = [8, 16], strides = [1, 1]} : vector<64x16xf32> to vector<8x16xf32>
    %cst_61 = arith.constant dense<0.000000e+00> : vector<8x32xf32>
    %69 = tpu.matmul %68, %8, %cst_61 {dimension_numbers = #tpu.dot_dimension_numbers<[1], [0], [0], [1], [0, 0, 1, 1], [], []>} : vector<8x16xf32>, vector<16x32xf32>, vector<8x32xf32> -> vector<8x32xf32>
    %70 = arith.addf %67, %69 : vector<8x32xf32>
    %71 = vector.extract_strided_slice %50 {offsets = [56, 0], sizes = [8, 16], strides = [1, 1]} : vector<64x16xf32> to vector<8x16xf32>
    %cst_62 = arith.constant dense<0.000000e+00> : vector<8x32xf32>
    %72 = tpu.matmul %71, %10, %cst_62 {dimension_numbers = #tpu.dot_dimension_numbers<[1], [0], [0], [1], [0, 0, 1, 1], [], []>} : vector<8x16xf32>, vector<16x32xf32>, vector<8x32xf32> -> vector<8x32xf32>
    %73 = arith.addf %70, %72 : vector<8x32xf32>
    %c0_63 = arith.constant 0 : index
    %c0_64 = arith.constant 0 : index
    %c0_65 = arith.constant 0 : index
    %c3_66 = arith.constant 3 : index
    %c0_67 = arith.constant 0 : index
    %74 = vector.load %arg7[%c0_63, %c0_64, %c0_65, %c3_66, %c0_67] : memref<1x8x1x8x32xf32, #tpu.memory_space<vmem>>, vector<1x8x1x1x32xf32>
    %75 = vector.shape_cast %74 : vector<1x8x1x1x32xf32> to vector<8x32xf32>
    %76 = vector.shape_cast %73 : vector<8x32xf32> to vector<1x8x1x1x32xf32>
    tpu.vector_store %arg7[%c0_63, %c0_64, %c0_65, %c3_66, %c0_67], %76 {strides = array<i32>} : memref<1x8x1x8x32xf32, #tpu.memory_space<vmem>>, vector<1x8x1x1x32xf32>,
    %c0_68 = arith.constant 0 : index
    %c0_69 = arith.constant 0 : index
    %c0_70 = arith.constant 0 : index
    %c2_71 = arith.constant 2 : index
    %c0_72 = arith.constant 0 : index
    %77 = vector.load %arg2[%c0_68, %c0_69, %c0_70, %c2_71, %c0_72] : memref<1x4x1x4x16xf32, #tpu.memory_space<vmem>>, vector<1x4x1x1x16xf32>
    %78 = vector.shape_cast %77 : vector<1x4x1x1x16xf32> to vector<4x16xf32>
    %c0_73 = arith.constant 0 : index
    %c0_74 = arith.constant 0 : index
    %c0_75 = arith.constant 0 : index
    %c3_76 = arith.constant 3 : index
    %c0_77 = arith.constant 0 : index
    %79 = vector.load %arg2[%c0_73, %c0_74, %c0_75, %c3_76, %c0_77] : memref<1x4x1x4x16xf32, #tpu.memory_space<vmem>>, vector<1x4x1x1x16xf32>
    %80 = vector.shape_cast %79 : vector<1x4x1x1x16xf32> to vector<4x16xf32>
    %cst_78 = arith.constant dense<0.000000e+00> : vector<64x16xf32>
    %81 = tpu.matmul %1, %78, %cst_78 {dimension_numbers = #tpu.dot_dimension_numbers<[1], [0], [0], [1], [0, 0, 1, 1], [], []>} : vector<64x4xf32>, vector<4x16xf32>, vector<64x16xf32> -> vector<64x16xf32>
    %cst_79 = arith.constant dense<0.000000e+00> : vector<64x16xf32>
    %82 = tpu.matmul %3, %80, %cst_79 {dimension_numbers = #tpu.dot_dimension_numbers<[1], [0], [0], [1], [0, 0, 1, 1], [], []>} : vector<64x4xf32>, vector<4x16xf32>, vector<64x16xf32> -> vector<64x16xf32>
    %83 = arith.addf %81, %82 : vector<64x16xf32>
    %84 = vector.extract_strided_slice %83 {offsets = [0, 0], sizes = [8, 16], strides = [1, 1]} : vector<64x16xf32> to vector<8x16xf32>
    %cst_80 = arith.constant dense<0.000000e+00> : vector<8x32xf32>
    %85 = tpu.matmul %84, %6, %cst_80 {dimension_numbers = #tpu.dot_dimension_numbers<[1], [0], [0], [1], [0, 0, 1, 1], [], []>} : vector<8x16xf32>, vector<16x32xf32>, vector<8x32xf32> -> vector<8x32xf32>
    %86 = vector.broadcast %4 : vector<8x1xf32> to vector<8x32xf32>
    %87 = arith.addf %86, %85 : vector<8x32xf32>
    %88 = vector.extract_strided_slice %83 {offsets = [16, 0], sizes = [8, 16], strides = [1, 1]} : vector<64x16xf32> to vector<8x16xf32>
    %cst_81 = arith.constant dense<0.000000e+00> : vector<8x32xf32>
    %89 = tpu.matmul %88, %8, %cst_81 {dimension_numbers = #tpu.dot_dimension_numbers<[1], [0], [0], [1], [0, 0, 1, 1], [], []>} : vector<8x16xf32>, vector<16x32xf32>, vector<8x32xf32> -> vector<8x32xf32>
    %90 = arith.addf %87, %89 : vector<8x32xf32>
    %91 = vector.extract_strided_slice %83 {offsets = [24, 0], sizes = [8, 16], strides = [1, 1]} : vector<64x16xf32> to vector<8x16xf32>
    %cst_82 = arith.constant dense<0.000000e+00> : vector<8x32xf32>
    %92 = tpu.matmul %91, %10, %cst_82 {dimension_numbers = #tpu.dot_dimension_numbers<[1], [0], [0], [1], [0, 0, 1, 1], [], []>} : vector<8x16xf32>, vector<16x32xf32>, vector<8x32xf32> -> vector<8x32xf32>
    %93 = arith.addf %90, %92 : vector<8x32xf32>
    %c0_83 = arith.constant 0 : index
    %c0_84 = arith.constant 0 : index
    %c0_85 = arith.constant 0 : index
    %c4 = arith.constant 4 : index
    %c0_86 = arith.constant 0 : index
    %94 = vector.load %arg7[%c0_83, %c0_84, %c0_85, %c4, %c0_86] : memref<1x8x1x8x32xf32, #tpu.memory_space<vmem>>, vector<1x8x1x1x32xf32>
    %95 = vector.shape_cast %94 : vector<1x8x1x1x32xf32> to vector<8x32xf32>
    %96 = vector.shape_cast %93 : vector<8x32xf32> to vector<1x8x1x1x32xf32>
    tpu.vector_store %arg7[%c0_83, %c0_84, %c0_85, %c4, %c0_86], %96 {strides = array<i32>} : memref<1x8x1x8x32xf32, #tpu.memory_space<vmem>>, vector<1x8x1x1x32xf32>,
    %97 = vector.extract_strided_slice %83 {offsets = [32, 0], sizes = [8, 16], strides = [1, 1]} : vector<64x16xf32> to vector<8x16xf32>
    %cst_87 = arith.constant dense<0.000000e+00> : vector<8x32xf32>
    %98 = tpu.matmul %97, %6, %cst_87 {dimension_numbers = #tpu.dot_dimension_numbers<[1], [0], [0], [1], [0, 0, 1, 1], [], []>} : vector<8x16xf32>, vector<16x32xf32>, vector<8x32xf32> -> vector<8x32xf32>
    %99 = vector.broadcast %4 : vector<8x1xf32> to vector<8x32xf32>
    %100 = arith.addf %99, %98 : vector<8x32xf32>
    %101 = vector.extract_strided_slice %83 {offsets = [48, 0], sizes = [8, 16], strides = [1, 1]} : vector<64x16xf32> to vector<8x16xf32>
    %cst_88 = arith.constant dense<0.000000e+00> : vector<8x32xf32>
    %102 = tpu.matmul %101, %8, %cst_88 {dimension_numbers = #tpu.dot_dimension_numbers<[1], [0], [0], [1], [0, 0, 1, 1], [], []>} : vector<8x16xf32>, vector<16x32xf32>, vector<8x32xf32> -> vector<8x32xf32>
    %103 = arith.addf %100, %102 : vector<8x32xf32>
    %104 = vector.extract_strided_slice %83 {offsets = [56, 0], sizes = [8, 16], strides = [1, 1]} : vector<64x16xf32> to vector<8x16xf32>
    %cst_89 = arith.constant dense<0.000000e+00> : vector<8x32xf32>
    %105 = tpu.matmul %104, %10, %cst_89 {dimension_numbers = #tpu.dot_dimension_numbers<[1], [0], [0], [1], [0, 0, 1, 1], [], []>} : vector<8x16xf32>, vector<16x32xf32>, vector<8x32xf32> -> vector<8x32xf32>
    %106 = arith.addf %103, %105 : vector<8x32xf32>
    %c0_90 = arith.constant 0 : index
    %c0_91 = arith.constant 0 : index
    %c0_92 = arith.constant 0 : index
    %c5 = arith.constant 5 : index
    %c0_93 = arith.constant 0 : index
    %107 = vector.load %arg7[%c0_90, %c0_91, %c0_92, %c5, %c0_93] : memref<1x8x1x8x32xf32, #tpu.memory_space<vmem>>, vector<1x8x1x1x32xf32>
    %108 = vector.shape_cast %107 : vector<1x8x1x1x32xf32> to vector<8x32xf32>
    %109 = vector.shape_cast %106 : vector<8x32xf32> to vector<1x8x1x1x32xf32>
    tpu.vector_store %arg7[%c0_90, %c0_91, %c0_92, %c5, %c0_93], %109 {strides = array<i32>} : memref<1x8x1x8x32xf32, #tpu.memory_space<vmem>>, vector<1x8x1x1x32xf32>,
    %c0_94 = arith.constant 0 : index
    %c0_95 = arith.constant 0 : index
    %c0_96 = arith.constant 0 : index
    %c3_97 = arith.constant 3 : index
    %c0_98 = arith.constant 0 : index
    %110 = vector.load %arg2[%c0_94, %c0_95, %c0_96, %c3_97, %c0_98] : memref<1x4x1x4x16xf32, #tpu.memory_space<vmem>>, vector<1x4x1x1x16xf32>
    %111 = vector.shape_cast %110 : vector<1x4x1x1x16xf32> to vector<4x16xf32>
    %c0_99 = arith.constant 0 : index
    %c0_100 = arith.constant 0 : index
    %c0_101 = arith.constant 0 : index
    %c0_102 = arith.constant 0 : index
    %c0_103 = arith.constant 0 : index
    %112 = vector.load %arg3[%c0_99, %c0_100, %c0_101, %c0_102, %c0_103] : memref<1x4x1x1x16xf32, #tpu.memory_space<vmem>>, vector<1x4x1x1x16xf32>
    %113 = vector.shape_cast %112 : vector<1x4x1x1x16xf32> to vector<4x16xf32>
    %cst_104 = arith.constant dense<0.000000e+00> : vector<64x16xf32>
    %114 = tpu.matmul %1, %111, %cst_104 {dimension_numbers = #tpu.dot_dimension_numbers<[1], [0], [0], [1], [0, 0, 1, 1], [], []>} : vector<64x4xf32>, vector<4x16xf32>, vector<64x16xf32> -> vector<64x16xf32>
    %cst_105 = arith.constant dense<0.000000e+00> : vector<64x16xf32>
    %115 = tpu.matmul %3, %113, %cst_105 {dimension_numbers = #tpu.dot_dimension_numbers<[1], [0], [0], [1], [0, 0, 1, 1], [], []>} : vector<64x4xf32>, vector<4x16xf32>, vector<64x16xf32> -> vector<64x16xf32>
    %116 = arith.addf %114, %115 : vector<64x16xf32>
    %117 = vector.extract_strided_slice %116 {offsets = [0, 0], sizes = [8, 16], strides = [1, 1]} : vector<64x16xf32> to vector<8x16xf32>
    %cst_106 = arith.constant dense<0.000000e+00> : vector<8x32xf32>
    %118 = tpu.matmul %117, %6, %cst_106 {dimension_numbers = #tpu.dot_dimension_numbers<[1], [0], [0], [1], [0, 0, 1, 1], [], []>} : vector<8x16xf32>, vector<16x32xf32>, vector<8x32xf32> -> vector<8x32xf32>
    %119 = vector.broadcast %4 : vector<8x1xf32> to vector<8x32xf32>
    %120 = arith.addf %119, %118 : vector<8x32xf32>
    %121 = vector.extract_strided_slice %116 {offsets = [16, 0], sizes = [8, 16], strides = [1, 1]} : vector<64x16xf32> to vector<8x16xf32>
    %cst_107 = arith.constant dense<0.000000e+00> : vector<8x32xf32>
    %122 = tpu.matmul %121, %8, %cst_107 {dimension_numbers = #tpu.dot_dimension_numbers<[1], [0], [0], [1], [0, 0, 1, 1], [], []>} : vector<8x16xf32>, vector<16x32xf32>, vector<8x32xf32> -> vector<8x32xf32>
    %123 = arith.addf %120, %122 : vector<8x32xf32>
    %124 = vector.extract_strided_slice %116 {offsets = [24, 0], sizes = [8, 16], strides = [1, 1]} : vector<64x16xf32> to vector<8x16xf32>
    %cst_108 = arith.constant dense<0.000000e+00> : vector<8x32xf32>
    %125 = tpu.matmul %124, %10, %cst_108 {dimension_numbers = #tpu.dot_dimension_numbers<[1], [0], [0], [1], [0, 0, 1, 1], [], []>} : vector<8x16xf32>, vector<16x32xf32>, vector<8x32xf32> -> vector<8x32xf32>
    %126 = arith.addf %123, %125 : vector<8x32xf32>
    %c0_109 = arith.constant 0 : index
    %c0_110 = arith.constant 0 : index
    %c0_111 = arith.constant 0 : index
    %c6 = arith.constant 6 : index
    %c0_112 = arith.constant 0 : index
    %127 = vector.load %arg7[%c0_109, %c0_110, %c0_111, %c6, %c0_112] : memref<1x8x1x8x32xf32, #tpu.memory_space<vmem>>, vector<1x8x1x1x32xf32>
    %128 = vector.shape_cast %127 : vector<1x8x1x1x32xf32> to vector<8x32xf32>
    %129 = vector.shape_cast %126 : vector<8x32xf32> to vector<1x8x1x1x32xf32>
    tpu.vector_store %arg7[%c0_109, %c0_110, %c0_111, %c6, %c0_112], %129 {strides = array<i32>} : memref<1x8x1x8x32xf32, #tpu.memory_space<vmem>>, vector<1x8x1x1x32xf32>,
    %130 = vector.extract_strided_slice %116 {offsets = [32, 0], sizes = [8, 16], strides = [1, 1]} : vector<64x16xf32> to vector<8x16xf32>
    %cst_113 = arith.constant dense<0.000000e+00> : vector<8x32xf32>
    %131 = tpu.matmul %130, %6, %cst_113 {dimension_numbers = #tpu.dot_dimension_numbers<[1], [0], [0], [1], [0, 0, 1, 1], [], []>} : vector<8x16xf32>, vector<16x32xf32>, vector<8x32xf32> -> vector<8x32xf32>
    %132 = vector.broadcast %4 : vector<8x1xf32> to vector<8x32xf32>
    %133 = arith.addf %132, %131 : vector<8x32xf32>
    %134 = vector.extract_strided_slice %116 {offsets = [48, 0], sizes = [8, 16], strides = [1, 1]} : vector<64x16xf32> to vector<8x16xf32>
    %cst_114 = arith.constant dense<0.000000e+00> : vector<8x32xf32>
    %135 = tpu.matmul %134, %8, %cst_114 {dimension_numbers = #tpu.dot_dimension_numbers<[1], [0], [0], [1], [0, 0, 1, 1], [], []>} : vector<8x16xf32>, vector<16x32xf32>, vector<8x32xf32> -> vector<8x32xf32>
    %136 = arith.addf %133, %135 : vector<8x32xf32>
    %137 = vector.extract_strided_slice %116 {offsets = [56, 0], sizes = [8, 16], strides = [1, 1]} : vector<64x16xf32> to vector<8x16xf32>
    %cst_115 = arith.constant dense<0.000000e+00> : vector<8x32xf32>
    %138 = tpu.matmul %137, %10, %cst_115 {dimension_numbers = #tpu.dot_dimension_numbers<[1], [0], [0], [1], [0, 0, 1, 1], [], []>} : vector<8x16xf32>, vector<16x32xf32>, vector<8x32xf32> -> vector<8x32xf32>
    %139 = arith.addf %136, %138 : vector<8x32xf32>
    %c0_116 = arith.constant 0 : index
    %c0_117 = arith.constant 0 : index
    %c0_118 = arith.constant 0 : index
    %c7 = arith.constant 7 : index
    %c0_119 = arith.constant 0 : index
    %140 = vector.load %arg7[%c0_116, %c0_117, %c0_118, %c7, %c0_119] : memref<1x8x1x8x32xf32, #tpu.memory_space<vmem>>, vector<1x8x1x1x32xf32>
    %141 = vector.shape_cast %140 : vector<1x8x1x1x32xf32> to vector<8x32xf32>
    %142 = vector.shape_cast %139 : vector<8x32xf32> to vector<1x8x1x1x32xf32>
    tpu.vector_store %arg7[%c0_116, %c0_117, %c0_118, %c7, %c0_119], %142 {strides = array<i32>} : memref<1x8x1x8x32xf32, #tpu.memory_space<vmem>>, vector<1x8x1x1x32xf32>,
    return
  }
  func.func @transform_0(%arg0: i32, %arg1: i32) -> (i32, i32, i32, i32, i32) {
    %c0_i32 = arith.constant 0 : i32
    %c0_i32_0 = arith.constant 0 : i32
    %c0_i32_1 = arith.constant 0 : i32
    %c0_i32_2 = arith.constant 0 : i32
    return %arg0, %c0_i32, %arg1, %c0_i32_0, %c0_i32_1 : i32, i32, i32, i32, i32
  }
  func.func @transform_1(%arg0: i32, %arg1: i32) -> (i32, i32, i32, i32, i32) {
    %c0_i32 = arith.constant 0 : i32
    %c0_i32_0 = arith.constant 0 : i32
    %c0_i32_1 = arith.constant 0 : i32
    %c0_i32_2 = arith.constant 0 : i32
    return %arg0, %c0_i32, %arg1, %c0_i32_0, %c0_i32_1 : i32, i32, i32, i32, i32
  }
  func.func @transform_2(%arg0: i32, %arg1: i32) -> (i32, i32, i32) {
    %c0_i32 = arith.constant 0 : i32
    %c0_i32_0 = arith.constant 0 : i32
    %c0_i32_1 = arith.constant 0 : i32
    %c0_i32_2 = arith.constant 0 : i32
    return %c0_i32, %c0_i32_0, %c0_i32_1 : i32, i32, i32
  }
  func.func @transform_3(%arg0: i32, %arg1: i32) -> (i32, i32, i32) {
    %c0_i32 = arith.constant 0 : i32
    %c0_i32_0 = arith.constant 0 : i32
    %c0_i32_1 = arith.constant 0 : i32
    %c0_i32_2 = arith.constant 0 : i32
    return %c0_i32, %c0_i32_0, %c0_i32_1 : i32, i32, i32
  }
  func.func @transform_4(%arg0: i32, %arg1: i32) -> (i32, i32) {
    %c0_i32 = arith.constant 0 : i32
    %c0_i32_0 = arith.constant 0 : i32
    %c0_i32_1 = arith.constant 0 : i32
    return %c0_i32, %c0_i32_0 : i32, i32
  }
  func.func @transform_5(%arg0: i32, %arg1: i32) -> (i32, i32, i32, i32, i32) {
    %c0_i32 = arith.constant 0 : i32
    %c0_i32_0 = arith.constant 0 : i32
    %c0_i32_1 = arith.constant 0 : i32
    %c0_i32_2 = arith.constant 0 : i32
    return %arg0, %c0_i32, %arg1, %c0_i32_0, %c0_i32_1 : i32, i32, i32, i32, i32
  }
}

</mosaic_0001>

<llo_original>
// kernel: conv_transpose_block.1
$region0: #{conv_transpose_block.1}
  #allocation0 [shape = 'u32[]', space=smem, size = 0x4, offset = 0x4, fixed_abs, tag = 'smem constant byte address 0x4 - core index']
  #allocation1 [shape = 'u32[72,128]{1,0:T(1,128)}', space=vmem, size = 0x9000, scoped, tag = 'internal scratch']
  %s0 = inlined_call_operand.vmem [shape: f32[2,4,4,4,16], index: 0, kind: input, shape index: {}]
  %s1 = inlined_call_operand.vmem [shape: f32[2,4,4,1,16], index: 1, kind: input, shape index: {}]
  %s2 = inlined_call_operand.vmem [shape: f32[2,64,4], index: 2, kind: input, shape index: {}]
  %s3 = inlined_call_operand.vmem [shape: f32[4,16,32], index: 3, kind: input, shape index: {}]
  %s4 = inlined_call_operand.vmem [shape: f32[8,1], index: 4, kind: input, shape index: {}]
  %s5 = inlined_call_operand.hbm [shape: f32[2,8,4,8,32], index: 5, kind: output, shape index: {}]
  %s6 = sld [smem:[#allocation0]]
  $region128: #{conv_transpose_block.1} parent=0
    _
  %s8 = ssub.s32 1, %s6
  %s9 = scalar_select 0, %s8, %s6
  $region1: #{conv_transpose_block.1} parent=0
    #allocation2 [shape = 'u8[16384]{0}', space=vmem, size = 0x4000, scoped, tag = 'input window, operand 0']
    #allocation3 [shape = 'u8[4096]{0}', space=vmem, size = 0x1000, scoped, tag = 'input window, operand 1']
    #allocation4 [shape = 'u8[65536]{0}', space=vmem, size = 0x10000, scoped, tag = 'output window, operand 0']
    #allocation5 [shape = 's32[2]{0}', space=sflag, size = 0x8, scoped, tag = 'scoped memory for conv_transpose_block.1']
    %10 = vsyncpa [#allocation5], 0
    %s11 = scalar_lea.sflag [#allocation5], 1
    %12 = vsyncpa %s11, 0
    loop: start=0, step=1, limit=10
    $region2: #{conv_transpose_block.1} parent=1 // loop_pre_header
      _
    $region3: #{conv_transpose_block.1} parent=1 // loop_header
      %s14 = sphi 0, %s18
      %p15 = scmp.ge.s32.totalorder %s14, 10
      %s21 = sphi 0, %s33
      %s22 = sphi 0, %s29
      %s23 = sphi 0, %s21
      %s24 = sphi 0, %s22
      %s25 = sphi 0, %s23
      %s26 = sphi 0, %s24
      %s38 = sphi 0, %s40
      %s41 = sphi 0, %s38
      %s42 = sphi 0, %s41
      %s58 = sphi 0, %s42
      %s66 = sphi 0, %s68
      %s69 = sphi 0, %s66
      %s70 = sphi 0, %s69
      %s86 = sphi 0, %s70
      %s90 = sphi 0, %s90
      %s92 = sphi 0, %s90
      %s93 = sphi 0, %s92
      %s107 = sphi 0, %s93
      %s111 = sphi 0, %s111
      %s113 = sphi 0, %s111
      %s114 = sphi 0, %s113
      %s128 = sphi 0, %s114
      %s132 = sphi 0, %s132
      %s134 = sphi 0, %s132
      %s135 = sphi 0, %s134
      %s149 = sphi 0, %s135
      %s157 = sphi 0, %s159
      %s160 = sphi 0, %s157
      %s161 = sphi 0, %s160
      %s177 = sphi 0, %s161
    $region4: #{conv_transpose_block.1} parent=1 // loop_header_branch
      %17 = sbr.rel (%p15) target = $region8
    $region5: #{conv_transpose_block.1} parent=1 // loop_body
      %s19 = ssub.s32 %s14, 1
      %s20 = ssub.s32 %s14, 2
      %s27 = sadd.s32 1, %s22
      %p28 = scmp.ge.s32.totalorder %s27, 4
      %s29 = scalar_select %p28, 0, %s27
      %s30 = sadd.s32 1, %s21
      %s31 = scalar_select %p28, %s30, %s21
      %p32 = scmp.ge.s32.totalorder %s31, 2
      %s33 = scalar_select %p32, 0, %s31
      %s34 = ssub.s32 %s21, %s33
      %s35 = ssub.s32 %s22, %s29
      %s36 = sor.u32 %s34, %s35
      %p37 = scmp.eq.s32.totalorder %s36, 0
      %s39 = sadd.s32 %s38, 1
      %s40 = scalar_select %p37, %s38, %s39
      %p43 = pneg %p37
      %p44 = scmp.eq.s32.totalorder %s14, 7
      %p45 = por %p43, %p44
      %p46 = scmp.ne.s32.totalorder %s38, %s41
      %p47 = scmp.eq.s32.totalorder %s14, 0
      %p48 = por %p46, %p47
      %p49 = scmp.ne.s32.totalorder %s38, %s41
      %p50 = scmp.eq.s32.totalorder %s19, 7
      %p51 = por %p49, %p50
      %p52 = scmp.ne.s32.totalorder %s41, %s42
      %p53 = scmp.eq.s32.totalorder %s19, 0
      %p54 = por %p52, %p53
      %p55 = scmp.ne.s32.totalorder %s41, %s42
      %p56 = scmp.eq.s32.totalorder %s20, 7
      %p57 = por %p55, %p56
      %p59 = scmp.ne.s32.totalorder %s42, %s58
      %p60 = scmp.eq.s32.totalorder %s20, 0
      %p61 = por %p59, %p60
      %s62 = ssub.s32 %s21, %s33
      %s63 = ssub.s32 %s22, %s29
      %s64 = sor.u32 %s62, %s63
      %p65 = scmp.eq.s32.totalorder %s64, 0
      %s67 = sadd.s32 %s66, 1
      %s68 = scalar_select %p65, %s66, %s67
      %p71 = pneg %p65
      %p72 = scmp.eq.s32.totalorder %s14, 7
      %p73 = por %p71, %p72
      %p74 = scmp.ne.s32.totalorder %s66, %s69
      %p75 = scmp.eq.s32.totalorder %s14, 0
      %p76 = por %p74, %p75
      %p77 = scmp.ne.s32.totalorder %s66, %s69
      %p78 = scmp.eq.s32.totalorder %s19, 7
      %p79 = por %p77, %p78
      %p80 = scmp.ne.s32.totalorder %s69, %s70
      %p81 = scmp.eq.s32.totalorder %s19, 0
      %p82 = por %p80, %p81
      %p83 = scmp.ne.s32.totalorder %s69, %s70
      %p84 = scmp.eq.s32.totalorder %s20, 7
      %p85 = por %p83, %p84
      %p87 = scmp.ne.s32.totalorder %s70, %s86
      %p88 = scmp.eq.s32.totalorder %s20, 0
      %p89 = por %p87, %p88
      %s91 = sadd.s32 %s90, 1
      %p94 = scmp.eq.s32.totalorder %s14, 7
      %p95 = scmp.ne.s32.totalorder %s90, %s92
      %p96 = scmp.eq.s32.totalorder %s14, 0
      %p97 = por %p95, %p96
      %p98 = scmp.ne.s32.totalorder %s90, %s92
      %p99 = scmp.eq.s32.totalorder %s19, 7
      %p100 = por %p98, %p99
      %p101 = scmp.ne.s32.totalorder %s92, %s93
      %p102 = scmp.eq.s32.totalorder %s19, 0
      %p103 = por %p101, %p102
      %p104 = scmp.ne.s32.totalorder %s92, %s93
      %p105 = scmp.eq.s32.totalorder %s20, 7
      %p106 = por %p104, %p105
      %p108 = scmp.ne.s32.totalorder %s93, %s107
      %p109 = scmp.eq.s32.totalorder %s20, 0
      %p110 = por %p108, %p109
      %s112 = sadd.s32 %s111, 1
      %p115 = scmp.eq.s32.totalorder %s14, 7
      %p116 = scmp.ne.s32.totalorder %s111, %s113
      %p117 = scmp.eq.s32.totalorder %s14, 0
      %p118 = por %p116, %p117
      %p119 = scmp.ne.s32.totalorder %s111, %s113
      %p120 = scmp.eq.s32.totalorder %s19, 7
      %p121 = por %p119, %p120
      %p122 = scmp.ne.s32.totalorder %s113, %s114
      %p123 = scmp.eq.s32.totalorder %s19, 0
      %p124 = por %p122, %p123
      %p125 = scmp.ne.s32.totalorder %s113, %s114
      %p126 = scmp.eq.s32.totalorder %s20, 7
      %p127 = por %p125, %p126
      %p129 = scmp.ne.s32.totalorder %s114, %s128
      %p130 = scmp.eq.s32.totalorder %s20, 0
      %p131 = por %p129, %p130
      %s133 = sadd.s32 %s132, 1
      %p136 = scmp.eq.s32.totalorder %s14, 7
      %p137 = scmp.ne.s32.totalorder %s132, %s134
      %p138 = scmp.eq.s32.totalorder %s14, 0
      %p139 = por %p137, %p138
      %p140 = scmp.ne.s32.totalorder %s132, %s134
      %p141 = scmp.eq.s32.totalorder %s19, 7
      %p142 = por %p140, %p141
      %p143 = scmp.ne.s32.totalorder %s134, %s135
      %p144 = scmp.eq.s32.totalorder %s19, 0
      %p145 = por %p143, %p144
      %p146 = scmp.ne.s32.totalorder %s134, %s135
      %p147 = scmp.eq.s32.totalorder %s20, 7
      %p148 = por %p146, %p147
      %p150 = scmp.ne.s32.totalorder %s135, %s149
      %p151 = scmp.eq.s32.totalorder %s20, 0
      %p152 = por %p150, %p151
      %s153 = ssub.s32 %s21, %s33
      %s154 = ssub.s32 %s22, %s29
      %s155 = sor.u32 %s153, %s154
      %p156 = scmp.eq.s32.totalorder %s155, 0
      %s158 = sadd.s32 %s157, 1
      %s159 = scalar_select %p156, %s157, %s158
      %p162 = pneg %p156
      %p163 = scmp.eq.s32.totalorder %s14, 7
      %p164 = por %p162, %p163
      %p165 = scmp.ne.s32.totalorder %s157, %s160
      %p166 = scmp.eq.s32.totalorder %s14, 0
      %p167 = por %p165, %p166
      %p168 = scmp.ne.s32.totalorder %s157, %s160
      %p169 = scmp.eq.s32.totalorder %s19, 7
      %p170 = por %p168, %p169
      %p171 = scmp.ne.s32.totalorder %s160, %s161
      %p172 = scmp.eq.s32.totalorder %s19, 0
      %p173 = por %p171, %p172
      %p174 = scmp.ne.s32.totalorder %s160, %s161
      %p175 = scmp.eq.s32.totalorder %s20, 7
      %p176 = por %p174, %p175
      %p178 = scmp.ne.s32.totalorder %s161, %s177
      %p179 = scmp.eq.s32.totalorder %s20, 0
      %p180 = por %p178, %p179
      %p181 = scmp.le.s32.totalorder 1, %s14
      %p182 = scmp.lt.s32.totalorder %s14, 9
      %p183 = pnand %p181, %p182
      %p184 = pneg %p183
      // Predicated region
      $region9: #{conv_transpose_block.1} parent=5 // pred_check
        _
      $region10: #{conv_transpose_block.1} parent=5 // pred_check_branch
        %186 = sbr.rel (%p183) target = $region12
      $region11: #{conv_transpose_block.1} parent=5 // pred_region
        %s187 = ssub.s32 %s14, 1
        // Predicated region
        $region13: #{conv_transpose_block.1} parent=11 // pred_check
          %p188 = pneg %p103
        $region14: #{conv_transpose_block.1} parent=11 // pred_check_branch
          %190 = sbr.rel (%p188) target = $region16
        $region15: #{conv_transpose_block.1} parent=11 // pred_region
          _
        $region16: #{conv_transpose_block.1} parent=11 // pred_fallthru
          _
        // Predicated region
        $region17: #{conv_transpose_block.1} parent=11 // pred_check
          %p191 = pneg %p124
        $region18: #{conv_transpose_block.1} parent=11 // pred_check_branch
          %193 = sbr.rel (%p191) target = $region20
        $region19: #{conv_transpose_block.1} parent=11 // pred_region
          _
        $region20: #{conv_transpose_block.1} parent=11 // pred_fallthru
          _
        // Predicated region
        $region21: #{conv_transpose_block.1} parent=11 // pred_check
          %p194 = pneg %p145
        $region22: #{conv_transpose_block.1} parent=11 // pred_check_branch
          %196 = sbr.rel (%p194) target = $region24
        $region23: #{conv_transpose_block.1} parent=11 // pred_region
          _
        $region24: #{conv_transpose_block.1} parent=11 // pred_fallthru
          _
      $region12: #{conv_transpose_block.1} parent=5 // pred_fallthru
        _
      %p197 = scmp.lt.s32.totalorder %s14, 8
      // Predicated region
      $region25: #{conv_transpose_block.1} parent=5 // pred_check
        %p198 = pneg %p197
      $region26: #{conv_transpose_block.1} parent=5 // pred_check_branch
        %200 = sbr.rel (%p198) target = $region28
      $region27: #{conv_transpose_block.1} parent=5 // pred_region
        // Predicated region
        $region29: #{conv_transpose_block.1} parent=27 // pred_check
          %p201 = pneg %p48
        $region30: #{conv_transpose_block.1} parent=27 // pred_check_branch
          %203 = sbr.rel (%p201) target = $region32
        $region31: #{conv_transpose_block.1} parent=27 // pred_region
          %s204 = sand.u32 %s38, 1
          %s205 = sand.u32 %s38, 1
          %s206 = smul.addr %s205, 16
          %s207 = scalar_lea.vmem [#allocation2], %s206
          %s208 = smul.addr %s21, 16
          %s209 = sadd.s32 %s22, %s208
          %s210 = smul.addr %s209, 4
          %s211 = scalar_lea.vmem %s0, %s210
          // Predicated region
          $region33: #{conv_transpose_block.1} parent=31 // pred_check
            _
          $region34: #{conv_transpose_block.1} parent=31 // pred_check_branch
            %213 = sbr.rel (0) target = $region36
          $region35: #{conv_transpose_block.1} parent=31 // pred_region
            // Predicated region
            $region37: #{conv_transpose_block.1} parent=35 // pred_check
              _
            $region38: #{conv_transpose_block.1} parent=35 // pred_check_branch
              %215 = sbr.rel target = $region40
            $region39: #{conv_transpose_block.1} parent=35 // pred_region
              // Predicated region
              $region52: #{conv_transpose_block.1} parent=39 // pred_check
                _
              $region53: #{conv_transpose_block.1} parent=39 // pred_check_branch
                %237 = sbr.rel (0) target = $region55
              $region54: #{conv_transpose_block.1} parent=39 // pred_region
                loop: start=0, step=1, limit=1
                $region56: #{conv_transpose_block.1} parent=54 // loop_pre_header
                  _
                $region57: #{conv_transpose_block.1} parent=54 // loop_header
                  %s239 = sphi 0, %s243
                  %p240 = scmp.ge.s32.totalorder %s239, 1
                  %s244 = sphi %s211, %s211
                  %s245 = sphi %s207, %s207
                $region58: #{conv_transpose_block.1} parent=54 // loop_header_branch
                  %242 = sbr.rel (%p240) target = $region62
                $region59: #{conv_transpose_block.1} parent=54 // loop_body
                  _
                $region60: #{conv_transpose_block.1} parent=54 // loop_footer
                  %s243 = sadd.s32 1, %s239
                $region61: #{conv_transpose_block.1} parent=54 // loop_footer_branch
                  %238 = sbr.rel target = $region57
                $region62: #{conv_transpose_block.1} parent=54 // loop_exit
                  _
                %s247 = ssub.s32 16, 1
                loop: start=0, step=1, limit=1
                $region63: #{conv_transpose_block.1} parent=54 // loop_pre_header
                  _
                $region64: #{conv_transpose_block.1} parent=54 // loop_header
                  %s249 = sphi 0, %s253
                  %p250 = scmp.ge.s32.totalorder %s249, 1
                  %s254 = sphi %s211, %s211
                  %s255 = sphi %s207, %s207
                $region65: #{conv_transpose_block.1} parent=54 // loop_header_branch
                  %252 = sbr.rel (%p250) target = $region69
                $region66: #{conv_transpose_block.1} parent=54 // loop_body
                  %v256 = vld [vmem:[%s254] sm:%s247]
                  %257 = vst [vmem:[%s255] sm:%s247] %v256
                  %v258 = vld [vmem:[%s254 + $0x10] sm:%s247]
                  %259 = vst [vmem:[%s255 + $0x4] sm:%s247] %v258
                  %v260 = vld [vmem:[%s254 + $0x20] sm:%s247]
                  %261 = vst [vmem:[%s255 + $0x8] sm:%s247] %v260
                  %v262 = vld [vmem:[%s254 + $0x30] sm:%s247]
                  %263 = vst [vmem:[%s255 + $0xc] sm:%s247] %v262
                $region67: #{conv_transpose_block.1} parent=54 // loop_footer
                  %s253 = sadd.s32 1, %s249
                $region68: #{conv_transpose_block.1} parent=54 // loop_footer_branch
                  %248 = sbr.rel target = $region64
                $region69: #{conv_transpose_block.1} parent=54 // loop_exit
                  _
              $region55: #{conv_transpose_block.1} parent=39 // pred_fallthru
                _
            $region40: #{conv_transpose_block.1} parent=35 // pred_fallthru
              _
            // Predicated region
            $region41: #{conv_transpose_block.1} parent=35 // pred_check
              _
            $region42: #{conv_transpose_block.1} parent=35 // pred_check_branch
              %217 = sbr.rel (0) target = $region44
            $region43: #{conv_transpose_block.1} parent=35 // pred_region
              %s219 = ssub.s32 16, 1
              loop: start=0, step=1, limit=1
              $region45: #{conv_transpose_block.1} parent=43 // loop_pre_header
                _
              $region46: #{conv_transpose_block.1} parent=43 // loop_header
                %s221 = sphi 0, %s225
                %p222 = scmp.ge.s32.totalorder %s221, 1
                %s226 = sphi %s211, %s211
                %s227 = sphi %s207, %s207
              $region47: #{conv_transpose_block.1} parent=43 // loop_header_branch
                %224 = sbr.rel (%p222) target = $region51
              $region48: #{conv_transpose_block.1} parent=43 // loop_body
                %v228 = vld [vmem:[%s226] sm:%s219]
                %229 = vst [vmem:[%s227] sm:%s219] %v228
                %v230 = vld [vmem:[%s226 + $0x10] sm:%s219]
                %231 = vst [vmem:[%s227 + $0x4] sm:%s219] %v230
                %v232 = vld [vmem:[%s226 + $0x20] sm:%s219]
                %233 = vst [vmem:[%s227 + $0x8] sm:%s219] %v232
                %v234 = vld [vmem:[%s226 + $0x30] sm:%s219]
                %235 = vst [vmem:[%s227 + $0xc] sm:%s219] %v234
              $region49: #{conv_transpose_block.1} parent=43 // loop_footer
                %s225 = sadd.s32 1, %s221
              $region50: #{conv_transpose_block.1} parent=43 // loop_footer_branch
                %220 = sbr.rel target = $region46
              $region51: #{conv_transpose_block.1} parent=43 // loop_exit
                _
            $region44: #{conv_transpose_block.1} parent=35 // pred_fallthru
              _
          $region36: #{conv_transpose_block.1} parent=31 // pred_fallthru
            _
          %264 = vnop
        $region32: #{conv_transpose_block.1} parent=27 // pred_fallthru
          _
        // Predicated region
        $region70: #{conv_transpose_block.1} parent=27 // pred_check
          %p265 = pneg %p76
        $region71: #{conv_transpose_block.1} parent=27 // pred_check_branch
          %267 = sbr.rel (%p265) target = $region73
        $region72: #{conv_transpose_block.1} parent=27 // pred_region
          %s268 = sand.u32 %s66, 1
          %s269 = sand.u32 %s66, 1
          %s270 = smul.addr %s269, 4
          %s271 = scalar_lea.vmem [#allocation3], %s270
          %s272 = smul.addr %s21, 16
          %s273 = sadd.s32 %s22, %s272
          %s274 = scalar_lea.vmem %s1, %s273
          // Predicated region
          $region74: #{conv_transpose_block.1} parent=72 // pred_check
            _
          $region75: #{conv_transpose_block.1} parent=72 // pred_check_branch
            %276 = sbr.rel (0) target = $region77
          $region76: #{conv_transpose_block.1} parent=72 // pred_region
            // Predicated region
            $region78: #{conv_transpose_block.1} parent=76 // pred_check
              _
            $region79: #{conv_transpose_block.1} parent=76 // pred_check_branch
              %278 = sbr.rel target = $region81
            $region80: #{conv_transpose_block.1} parent=76 // pred_region
              // Predicated region
              $region93: #{conv_transpose_block.1} parent=80 // pred_check
                _
              $region94: #{conv_transpose_block.1} parent=80 // pred_check_branch
                %300 = sbr.rel (0) target = $region96
              $region95: #{conv_transpose_block.1} parent=80 // pred_region
                %s302 = ssub.s32 2, 1
                loop: start=0, step=1, limit=1
                $region97: #{conv_transpose_block.1} parent=95 // loop_pre_header
                  _
                $region98: #{conv_transpose_block.1} parent=95 // loop_header
                  %s304 = sphi 0, %s308
                  %p305 = scmp.ge.s32.totalorder %s304, 1
                  %s309 = sphi %s274, %s274
                  %s310 = sphi %s271, %s271
                $region99: #{conv_transpose_block.1} parent=95 // loop_header_branch
                  %307 = sbr.rel (%p305) target = $region103
                $region100: #{conv_transpose_block.1} parent=95 // loop_body
                  %v311 = vld [vmem:[%s309] sm:%s302]
                  %312 = vst [vmem:[%s310] sm:%s302] %v311
                  %v313 = vld [vmem:[%s309 + $0x4] sm:%s302]
                  %314 = vst [vmem:[%s310 + $0x1] sm:%s302] %v313
                  %v315 = vld [vmem:[%s309 + $0x8] sm:%s302]
                  %316 = vst [vmem:[%s310 + $0x2] sm:%s302] %v315
                  %v317 = vld [vmem:[%s309 + $0xc] sm:%s302]
                  %318 = vst [vmem:[%s310 + $0x3] sm:%s302] %v317
                $region101: #{conv_transpose_block.1} parent=95 // loop_footer
                  %s308 = sadd.s32 1, %s304
                $region102: #{conv_transpose_block.1} parent=95 // loop_footer_branch
                  %303 = sbr.rel target = $region98
                $region103: #{conv_transpose_block.1} parent=95 // loop_exit
                  _
              $region96: #{conv_transpose_block.1} parent=80 // pred_fallthru
                _
            $region81: #{conv_transpose_block.1} parent=76 // pred_fallthru
              _
            // Predicated region
            $region82: #{conv_transpose_block.1} parent=76 // pred_check
              _
            $region83: #{conv_transpose_block.1} parent=76 // pred_check_branch
              %280 = sbr.rel (0) target = $region85
            $region84: #{conv_transpose_block.1} parent=76 // pred_region
              %s282 = ssub.s32 2, 1
              loop: start=0, step=1, limit=1
              $region86: #{conv_transpose_block.1} parent=84 // loop_pre_header
                _
              $region87: #{conv_transpose_block.1} parent=84 // loop_header
                %s284 = sphi 0, %s288
                %p285 = scmp.ge.s32.totalorder %s284, 1
                %s289 = sphi %s274, %s274
                %s290 = sphi %s271, %s271
              $region88: #{conv_transpose_block.1} parent=84 // loop_header_branch
                %287 = sbr.rel (%p285) target = $region92
              $region89: #{conv_transpose_block.1} parent=84 // loop_body
                %v291 = vld [vmem:[%s289] sm:%s282]
                %292 = vst [vmem:[%s290] sm:%s282] %v291
                %v293 = vld [vmem:[%s289 + $0x4] sm:%s282]
                %294 = vst [vmem:[%s290 + $0x1] sm:%s282] %v293
                %v295 = vld [vmem:[%s289 + $0x8] sm:%s282]
                %296 = vst [vmem:[%s290 + $0x2] sm:%s282] %v295
                %v297 = vld [vmem:[%s289 + $0xc] sm:%s282]
                %298 = vst [vmem:[%s290 + $0x3] sm:%s282] %v297
              $region90: #{conv_transpose_block.1} parent=84 // loop_footer
                %s288 = sadd.s32 1, %s284
              $region91: #{conv_transpose_block.1} parent=84 // loop_footer_branch
                %283 = sbr.rel target = $region87
              $region92: #{conv_transpose_block.1} parent=84 // loop_exit
                _
            $region85: #{conv_transpose_block.1} parent=76 // pred_fallthru
              _
          $region77: #{conv_transpose_block.1} parent=72 // pred_fallthru
            _
          %319 = vnop
        $region73: #{conv_transpose_block.1} parent=27 // pred_fallthru
          _
      $region28: #{conv_transpose_block.1} parent=5 // pred_fallthru
        _
      %p320 = scmp.le.s32.totalorder 1, %s14
      %p321 = scmp.lt.s32.totalorder %s14, 9
      %p322 = pnand %p320, %p321
      %p323 = pneg %p322
      // Predicated region
      $region104: #{conv_transpose_block.1} parent=5 // pred_check
        _
      $region105: #{conv_transpose_block.1} parent=5 // pred_check_branch
        %325 = sbr.rel (%p322) target = $region107
      $region106: #{conv_transpose_block.1} parent=5 // pred_region
        %s326 = ssub.s32 %s14, 1
        %s327 = sand.u32 %s41, 1
        %s328 = sand.u32 %s41, 1
        %s329 = smul.addr %s328, 16
        %s330 = scalar_lea.vmem [#allocation2], %s329
        // Predicated region
        $region108: #{conv_transpose_block.1} parent=106 // pred_check
          %p331 = pneg %p54
        $region109: #{conv_transpose_block.1} parent=106 // pred_check_branch
          %333 = sbr.rel (%p331) target = $region111
        $region110: #{conv_transpose_block.1} parent=106 // pred_region
          _
        $region111: #{conv_transpose_block.1} parent=106 // pred_fallthru
          _
        %s334 = sand.u32 %s69, 1
        %s335 = sand.u32 %s69, 1
        %s336 = smul.addr %s335, 4
        %s337 = scalar_lea.vmem [#allocation3], %s336
        // Predicated region
        $region112: #{conv_transpose_block.1} parent=106 // pred_check
          %p338 = pneg %p82
        $region113: #{conv_transpose_block.1} parent=106 // pred_check_branch
          %340 = sbr.rel (%p338) target = $region115
        $region114: #{conv_transpose_block.1} parent=106 // pred_region
          _
        $region115: #{conv_transpose_block.1} parent=106 // pred_fallthru
          _
        %s341 = sand.u32 %s41, 1
        %s342 = sand.u32 %s41, 1
        %s343 = smul.addr %s342, 16
        %s344 = scalar_lea.vmem [#allocation2], %s343
        %p345 = pneg %p54
        %p346 = pneg %p51
        %s347 = sand.u32 %s69, 1
        %s348 = sand.u32 %s69, 1
        %s349 = smul.addr %s348, 4
        %s350 = scalar_lea.vmem [#allocation3], %s349
        %p351 = pneg %p82
        %p352 = pneg %p79
        %p353 = pneg %p103
        %p354 = pneg %p100
        %p355 = pneg %p124
        %p356 = pneg %p121
        %p357 = pneg %p145
        %p358 = pneg %p142
        %p359 = pneg %p173
        %p360 = pneg %p170
        %s361 = sand.u32 %s160, 1
        %s362 = scalar_lea.sflag [#allocation5], %s361
        %s363 = sand.u32 %s160, 1
        %s364 = smul.addr %s363, 64
        %s365 = scalar_lea.vmem [#allocation4], %s364
        %v366 = vld [vmem:[%s2] sm:$0xff]
        %v367 = vld [vmem:[%s2 + $0x8] sm:$0xff]
        %v368 = vld [vmem:[%s2 + $0x10] sm:$0xff]
        %v369 = vld [vmem:[%s2 + $0x18] sm:$0xff]
        %v370 = vld [vmem:[%s2 + $0x20] sm:$0xff]
        %v371 = vld [vmem:[%s2 + $0x28] sm:$0xff]
        %v372 = vld [vmem:[%s2 + $0x30] sm:$0xff]
        %v373 = vld [vmem:[%s2 + $0x38] sm:$0xff]
        %s374 = scalar_lea.vmem %s2, 64
        %v375 = vld [vmem:[%s374] sm:$0xff]
        %v376 = vld [vmem:[%s374 + $0x8] sm:$0xff]
        %v377 = vld [vmem:[%s374 + $0x10] sm:$0xff]
        %v378 = vld [vmem:[%s374 + $0x18] sm:$0xff]
        %v379 = vld [vmem:[%s374 + $0x20] sm:$0xff]
        %v380 = vld [vmem:[%s374 + $0x28] sm:$0xff]
        %v381 = vld [vmem:[%s374 + $0x30] sm:$0xff]
        %v382 = vld [vmem:[%s374 + $0x38] sm:$0xff]
        %v383 = vld [vmem:[%s4] sm:$0xff]
        %v384 = vld [vmem:[%s3] sm:$0xff]
        %v385 = vld [vmem:[%s3 + $0x8] sm:$0xff]
        %s386 = scalar_lea.vmem %s3, 16
        %v387 = vld [vmem:[%s386] sm:$0xff]
        %v388 = vld [vmem:[%s386 + $0x8] sm:$0xff]
        %s389 = scalar_lea.vmem %s3, 48
        %v390 = vld [vmem:[%s389] sm:$0xff]
        %v391 = vld [vmem:[%s389 + $0x8] sm:$0xff]
        %v392 = vld [vmem:[%s330] sm:$0x1]
        %v393 = vld [vmem:[%s330 + $0x4] sm:$0x1]
        %v394 = vld [vmem:[%s330 + $0x8] sm:$0x1]
        %v395 = vld [vmem:[%s330 + $0xc] sm:$0x1]
        %v396 = vld [vmem:[%s330 + $0x1] sm:$0x1]
        %v397 = vld [vmem:[%s330 + $0x5] sm:$0x1]
        %v398 = vld [vmem:[%s330 + $0x9] sm:$0x1]
        %v399 = vld [vmem:[%s330 + $0xd] sm:$0x1]
        %v404 = vrot.slane %v397, 7
        %vm405 = vcmask 1041409
        %v406 = vsel %vm405, %v404, %v396
        %v407 = vrot.slane %v398, 6
        %vm408 = vcmask 1042434
        %v409 = vsel %vm408, %v407, %v406
        %v410 = vrot.slane %v399, 5
        %vm411 = vcmask 1043459
        %v412 = vsel %vm411, %v410, %v409
        %vm413 = vcmask 31744
        %v415 = vsel %vm413, %v375, 0
        %v418 = vsel %vm413, %v376, 0
        %v421 = vsel %vm413, %v377, 0
        %v424 = vsel %vm413, %v378, 0
        %v427 = vsel %vm413, %v379, 0
        %v430 = vsel %vm413, %v380, 0
        %v433 = vsel %vm413, %v381, 0
        %v436 = vsel %vm413, %v382, 0
        %vm438 = vcmask 1043456
        %v439 = vsel %vm438, %v412, 0
        %441 = vmatpush.msra.mxu0 0.0
        %442 = vmatpush.msra.mxu0 0.0
        %443 = vmatpush.msra.mxu0 0.0
        %444 = vmatpush.msra.mxu0 0.0
        %445 = vmatpush.msra.mxu0 0.0
        %446 = vmatpush.msra.mxu0 0.0
        %447 = vmatpush.msra.mxu0 0.0
        %448 = vmatpush.msra.mxu0 0.0
        %449 = vmatpush.msra.mxu0 0.0
        %450 = vmatpush.msra.mxu0 0.0
        %451 = vmatpush.msra.mxu0 0.0
        %452 = vmatpush.msra.mxu0 0.0
        %453 = vmatpush.msra.mxu0 0.0
        %454 = vmatpush.msra.mxu0 0.0
        %455 = vmatpush.msra.mxu0 0.0
        %456 = vmatpush.msra.mxu0 %v439
        %457 = vmatmul.f32.gmra.mxu0 %v415
        %v458 = vpop.f32.mrf.mxu0
        %v459 = vadd.f32 0.0, %v458
        %460 = vmatmul.f32.gmra.mxu0 %v418
        %v461 = vpop.f32.mrf.mxu0
        %462 = vmatmul.f32.gmra.mxu0 %v421
        %v463 = vpop.f32.mrf.mxu0
        %v464 = vadd.f32 0.0, %v463
        %465 = vmatmul.f32.gmra.mxu0 %v424
        %v466 = vpop.f32.mrf.mxu0
        %v467 = vadd.f32 0.0, %v466
        %468 = vmatmul.f32.gmra.mxu0 %v427
        %v469 = vpop.f32.mrf.mxu0
        %v470 = vadd.f32 0.0, %v469
        %471 = vmatmul.f32.gmra.mxu0 %v430
        %v472 = vpop.f32.mrf.mxu0
        %473 = vmatmul.f32.gmra.mxu0 %v433
        %v474 = vpop.f32.mrf.mxu0
        %v475 = vadd.f32 0.0, %v474
        %476 = vmatmul.f32.gmra.mxu0 %v436
        %v477 = vpop.f32.mrf.mxu0
        %v478 = vadd.f32 0.0, %v477
        %479 = vdwg.mxu0
        %v484 = vrot.slane %v393, 7
        %v485 = vsel %vm405, %v484, %v392
        %v486 = vrot.slane %v394, 6
        %v487 = vsel %vm408, %v486, %v485
        %v488 = vrot.slane %v395, 5
        %v489 = vsel %vm411, %v488, %v487
        %v491 = vsel %vm413, %v366, 0
        %v494 = vsel %vm413, %v367, 0
        %v497 = vsel %vm413, %v368, 0
        %v500 = vsel %vm413, %v369, 0
        %v503 = vsel %vm413, %v370, 0
        %v506 = vsel %vm413, %v371, 0
        %v509 = vsel %vm413, %v372, 0
        %v512 = vsel %vm413, %v373, 0
        %v514 = vsel %vm438, %v489, 0
        %516 = vmatpush.msra.mxu0 0.0
        %517 = vmatpush.msra.mxu0 0.0
        %518 = vmatpush.msra.mxu0 0.0
        %519 = vmatpush.msra.mxu0 0.0
        %520 = vmatpush.msra.mxu0 0.0
        %521 = vmatpush.msra.mxu0 0.0
        %522 = vmatpush.msra.mxu0 0.0
        %523 = vmatpush.msra.mxu0 0.0
        %524 = vmatpush.msra.mxu0 0.0
        %525 = vmatpush.msra.mxu0 0.0
        %526 = vmatpush.msra.mxu0 0.0
        %527 = vmatpush.msra.mxu0 0.0
        %528 = vmatpush.msra.mxu0 0.0
        %529 = vmatpush.msra.mxu0 0.0
        %530 = vmatpush.msra.mxu0 0.0
        %531 = vmatpush.msra.mxu0 %v514
        %532 = vmatmul.f32.gmra.mxu0 %v491
        %v533 = vpop.f32.mrf.mxu0
        %v534 = vadd.f32 %v459, %v533
        %535 = vmatmul.f32.gmra.mxu0 %v494
        %v536 = vpop.f32.mrf.mxu0
        %537 = vmatmul.f32.gmra.mxu0 %v497
        %v538 = vpop.f32.mrf.mxu0
        %v539 = vadd.f32 %v464, %v538
        %540 = vmatmul.f32.gmra.mxu0 %v500
        %v541 = vpop.f32.mrf.mxu0
        %v542 = vadd.f32 %v467, %v541
        %543 = vmatmul.f32.gmra.mxu0 %v503
        %v544 = vpop.f32.mrf.mxu0
        %v545 = vadd.f32 %v470, %v544
        %546 = vmatmul.f32.gmra.mxu0 %v506
        %v547 = vpop.f32.mrf.mxu0
        %548 = vmatmul.f32.gmra.mxu0 %v509
        %v549 = vpop.f32.mrf.mxu0
        %v550 = vadd.f32 %v475, %v549
        %551 = vmatmul.f32.gmra.mxu0 %v512
        %v552 = vpop.f32.mrf.mxu0
        %v553 = vadd.f32 %v478, %v552
        %554 = vdwg.mxu0
        %vm555 = vcmask 130048
        %v557 = vsel %vm555, %v534, 0
        %559 = vmatpush.msra.mxu0 0.0
        %560 = vmatpush.msra.mxu0 0.0
        %561 = vmatpush.msra.mxu0 0.0
        %562 = vmatpush.msra.mxu0 0.0
        %563 = vmatpush.msra.mxu0 0.0
        %564 = vmatpush.msra.mxu0 0.0
        %565 = vmatpush.msra.mxu0 0.0
        %566 = vmatpush.msra.mxu0 0.0
        %567 = vmatpush.msra.mxu0 0.0
        %568 = vmatpush.msra.mxu0 0.0
        %569 = vmatpush.msra.mxu0 0.0
        %570 = vmatpush.msra.mxu0 0.0
        %571 = vmatpush.msra.mxu0 0.0
        %572 = vmatpush.msra.mxu0 0.0
        %573 = vmatpush.msra.mxu0 %v385
        %574 = vmatpush.msra.mxu0 %v384
        %575 = vmatmul.f32.gmra.mxu0 %v557
        %v576 = vpop.f32.mrf.mxu0
        %v577 = vadd.f32 0.0, %v576
        %578 = vdwg.mxu0
        %580 = vset.pattern.permute.xlu0 0
        %581 = vperm.xlu0 %580, %v383
        %v582 = vpop.permute.xlu0 %581
        %v584 = vadd.f32 %v582, %v577
        %v586 = vsel %vm555, %v539, 0
        %588 = vmatpush.msra.mxu0 0.0
        %589 = vmatpush.msra.mxu0 0.0
        %590 = vmatpush.msra.mxu0 0.0
        %591 = vmatpush.msra.mxu0 0.0
        %592 = vmatpush.msra.mxu0 0.0
        %593 = vmatpush.msra.mxu0 0.0
        %594 = vmatpush.msra.mxu0 0.0
        %595 = vmatpush.msra.mxu0 0.0
        %596 = vmatpush.msra.mxu0 0.0
        %597 = vmatpush.msra.mxu0 0.0
        %598 = vmatpush.msra.mxu0 0.0
        %599 = vmatpush.msra.mxu0 0.0
        %600 = vmatpush.msra.mxu0 0.0
        %601 = vmatpush.msra.mxu0 0.0
        %602 = vmatpush.msra.mxu0 %v388
        %603 = vmatpush.msra.mxu0 %v387
        %604 = vmatmul.f32.gmra.mxu0 %v586
        %v605 = vpop.f32.mrf.mxu0
        %v606 = vadd.f32 0.0, %v605
        %607 = vdwg.mxu0
        %v608 = vadd.f32 %v584, %v606
        %v610 = vsel %vm555, %v542, 0
        %612 = vmatpush.msra.mxu0 0.0
        %613 = vmatpush.msra.mxu0 0.0
        %614 = vmatpush.msra.mxu0 0.0
        %615 = vmatpush.msra.mxu0 0.0
        %616 = vmatpush.msra.mxu0 0.0
        %617 = vmatpush.msra.mxu0 0.0
        %618 = vmatpush.msra.mxu0 0.0
        %619 = vmatpush.msra.mxu0 0.0
        %620 = vmatpush.msra.mxu0 0.0
        %621 = vmatpush.msra.mxu0 0.0
        %622 = vmatpush.msra.mxu0 0.0
        %623 = vmatpush.msra.mxu0 0.0
        %624 = vmatpush.msra.mxu0 0.0
        %625 = vmatpush.msra.mxu0 0.0
        %626 = vmatpush.msra.mxu0 %v391
        %627 = vmatpush.msra.mxu0 %v390
        %628 = vmatmul.f32.gmra.mxu0 %v610
        %v629 = vpop.f32.mrf.mxu0
        %v630 = vadd.f32 0.0, %v629
        %631 = vdwg.mxu0
        %v632 = vadd.f32 %v608, %v630
        %v634 = vrot.slane %v632, 1
        %v635 = vrot.slane %v632, 2
        %v636 = vrot.slane %v632, 3
        %v637 = vrot.slane %v632, 4
        %v638 = vrot.slane %v632, 5
        %v639 = vrot.slane %v632, 6
        %v640 = vrot.slane %v632, 7
        %vm648 = vcmask 253952
        %649 = vst.msk [vmem:[%s365] sm:$0x1] %vm648, %v632
        %650 = vst.msk [vmem:[%s365 + $0x8] sm:$0x1] %vm648, %v634
        %651 = vst.msk [vmem:[%s365 + $0x10] sm:$0x1] %vm648, %v635
        %652 = vst.msk [vmem:[%s365 + $0x18] sm:$0x1] %vm648, %v636
        %653 = vst.msk [vmem:[%s365 + $0x20] sm:$0x1] %vm648, %v637
        %654 = vst.msk [vmem:[%s365 + $0x28] sm:$0x1] %vm648, %v638
        %655 = vst.msk [vmem:[%s365 + $0x30] sm:$0x1] %vm648, %v639
        %656 = vst.msk [vmem:[%s365 + $0x38] sm:$0x1] %vm648, %v640
        %v658 = vsel %vm555, %v545, 0
        %660 = vmatpush.msra.mxu0 0.0
        %661 = vmatpush.msra.mxu0 0.0
        %662 = vmatpush.msra.mxu0 0.0
        %663 = vmatpush.msra.mxu0 0.0
        %664 = vmatpush.msra.mxu0 0.0
        %665 = vmatpush.msra.mxu0 0.0
        %666 = vmatpush.msra.mxu0 0.0
        %667 = vmatpush.msra.mxu0 0.0
        %668 = vmatpush.msra.mxu0 0.0
        %669 = vmatpush.msra.mxu0 0.0
        %670 = vmatpush.msra.mxu0 0.0
        %671 = vmatpush.msra.mxu0 0.0
        %672 = vmatpush.msra.mxu0 0.0
        %673 = vmatpush.msra.mxu0 0.0
        %674 = vmatpush.msra.mxu0 %v385
        %675 = vmatpush.msra.mxu0 %v384
        %676 = vmatmul.f32.gmra.mxu0 %v658
        %v677 = vpop.f32.mrf.mxu0
        %v678 = vadd.f32 0.0, %v677
        %679 = vdwg.mxu0
        %v680 = vadd.f32 %v582, %v678
        %v682 = vsel %vm555, %v550, 0
        %684 = vmatpush.msra.mxu0 0.0
        %685 = vmatpush.msra.mxu0 0.0
        %686 = vmatpush.msra.mxu0 0.0
        %687 = vmatpush.msra.mxu0 0.0
        %688 = vmatpush.msra.mxu0 0.0
        %689 = vmatpush.msra.mxu0 0.0
        %690 = vmatpush.msra.mxu0 0.0
        %691 = vmatpush.msra.mxu0 0.0
        %692 = vmatpush.msra.mxu0 0.0
        %693 = vmatpush.msra.mxu0 0.0
        %694 = vmatpush.msra.mxu0 0.0
        %695 = vmatpush.msra.mxu0 0.0
        %696 = vmatpush.msra.mxu0 0.0
        %697 = vmatpush.msra.mxu0 0.0
        %698 = vmatpush.msra.mxu0 %v388
        %699 = vmatpush.msra.mxu0 %v387
        %700 = vmatmul.f32.gmra.mxu0 %v682
        %v701 = vpop.f32.mrf.mxu0
        %v702 = vadd.f32 0.0, %v701
        %703 = vdwg.mxu0
        %v704 = vadd.f32 %v680, %v702
        %v706 = vsel %vm555, %v553, 0
        %708 = vmatpush.msra.mxu0 0.0
        %709 = vmatpush.msra.mxu0 0.0
        %710 = vmatpush.msra.mxu0 0.0
        %711 = vmatpush.msra.mxu0 0.0
        %712 = vmatpush.msra.mxu0 0.0
        %713 = vmatpush.msra.mxu0 0.0
        %714 = vmatpush.msra.mxu0 0.0
        %715 = vmatpush.msra.mxu0 0.0
        %716 = vmatpush.msra.mxu0 0.0
        %717 = vmatpush.msra.mxu0 0.0
        %718 = vmatpush.msra.mxu0 0.0
        %719 = vmatpush.msra.mxu0 0.0
        %720 = vmatpush.msra.mxu0 0.0
        %721 = vmatpush.msra.mxu0 0.0
        %722 = vmatpush.msra.mxu0 %v391
        %723 = vmatpush.msra.mxu0 %v390
        %724 = vmatmul.f32.gmra.mxu0 %v706
        %v725 = vpop.f32.mrf.mxu0
        %v726 = vadd.f32 0.0, %v725
        %727 = vdwg.mxu0
        %v728 = vadd.f32 %v704, %v726
        %v730 = vrot.slane %v728, 1
        %v731 = vrot.slane %v728, 2
        %v732 = vrot.slane %v728, 3
        %v733 = vrot.slane %v728, 4
        %v734 = vrot.slane %v728, 5
        %v735 = vrot.slane %v728, 6
        %v736 = vrot.slane %v728, 7
        %744 = vst.msk [vmem:[%s365 + $0x1] sm:$0x1] %vm648, %v728
        %745 = vst.msk [vmem:[%s365 + $0x9] sm:$0x1] %vm648, %v730
        %746 = vst.msk [vmem:[%s365 + $0x11] sm:$0x1] %vm648, %v731
        %747 = vst.msk [vmem:[%s365 + $0x19] sm:$0x1] %vm648, %v732
        %748 = vst.msk [vmem:[%s365 + $0x21] sm:$0x1] %vm648, %v733
        %749 = vst.msk [vmem:[%s365 + $0x29] sm:$0x1] %vm648, %v734
        %750 = vst.msk [vmem:[%s365 + $0x31] sm:$0x1] %vm648, %v735
        %751 = vst.msk [vmem:[%s365 + $0x39] sm:$0x1] %vm648, %v736
        %v752 = vld [vmem:[%s330 + $0x1] sm:$0x1]
        %v753 = vld [vmem:[%s330 + $0x5] sm:$0x1]
        %v754 = vld [vmem:[%s330 + $0x9] sm:$0x1]
        %v755 = vld [vmem:[%s330 + $0xd] sm:$0x1]
        %v756 = vld [vmem:[%s330 + $0x2] sm:$0x1]
        %v757 = vld [vmem:[%s330 + $0x6] sm:$0x1]
        %v758 = vld [vmem:[%s330 + $0xa] sm:$0x1]
        %v759 = vld [vmem:[%s330 + $0xe] sm:$0x1]
        %v764 = vrot.slane %v757, 7
        %v765 = vsel %vm405, %v764, %v756
        %v766 = vrot.slane %v758, 6
        %v767 = vsel %vm408, %v766, %v765
        %v768 = vrot.slane %v759, 5
        %v769 = vsel %vm411, %v768, %v767
        %v770 = vsel %vm438, %v769, 0
        %772 = vmatpush.msra.mxu0 0.0
        %773 = vmatpush.msra.mxu0 0.0
        %774 = vmatpush.msra.mxu0 0.0
        %775 = vmatpush.msra.mxu0 0.0
        %776 = vmatpush.msra.mxu0 0.0
        %777 = vmatpush.msra.mxu0 0.0
        %778 = vmatpush.msra.mxu0 0.0
        %779 = vmatpush.msra.mxu0 0.0
        %780 = vmatpush.msra.mxu0 0.0
        %781 = vmatpush.msra.mxu0 0.0
        %782 = vmatpush.msra.mxu0 0.0
        %783 = vmatpush.msra.mxu0 0.0
        %784 = vmatpush.msra.mxu0 0.0
        %785 = vmatpush.msra.mxu0 0.0
        %786 = vmatpush.msra.mxu0 0.0
        %787 = vmatpush.msra.mxu0 %v770
        %788 = vmatmul.f32.gmra.mxu0 %v415
        %v789 = vpop.f32.mrf.mxu0
        %v790 = vadd.f32 0.0, %v789
        %791 = vmatmul.f32.gmra.mxu0 %v418
        %v792 = vpop.f32.mrf.mxu0
        %793 = vmatmul.f32.gmra.mxu0 %v421
        %v794 = vpop.f32.mrf.mxu0
        %v795 = vadd.f32 0.0, %v794
        %796 = vmatmul.f32.gmra.mxu0 %v424
        %v797 = vpop.f32.mrf.mxu0
        %v798 = vadd.f32 0.0, %v797
        %799 = vmatmul.f32.gmra.mxu0 %v427
        %v800 = vpop.f32.mrf.mxu0
        %v801 = vadd.f32 0.0, %v800
        %802 = vmatmul.f32.gmra.mxu0 %v430
        %v803 = vpop.f32.mrf.mxu0
        %804 = vmatmul.f32.gmra.mxu0 %v433
        %v805 = vpop.f32.mrf.mxu0
        %v806 = vadd.f32 0.0, %v805
        %807 = vmatmul.f32.gmra.mxu0 %v436
        %v808 = vpop.f32.mrf.mxu0
        %v809 = vadd.f32 0.0, %v808
        %810 = vdwg.mxu0
        %v815 = vrot.slane %v753, 7
        %v816 = vsel %vm405, %v815, %v752
        %v817 = vrot.slane %v754, 6
        %v818 = vsel %vm408, %v817, %v816
        %v819 = vrot.slane %v755, 5
        %v820 = vsel %vm411, %v819, %v818
        %v821 = vsel %vm438, %v820, 0
        %823 = vmatpush.msra.mxu0 0.0
        %824 = vmatpush.msra.mxu0 0.0
        %825 = vmatpush.msra.mxu0 0.0
        %826 = vmatpush.msra.mxu0 0.0
        %827 = vmatpush.msra.mxu0 0.0
        %828 = vmatpush.msra.mxu0 0.0
        %829 = vmatpush.msra.mxu0 0.0
        %830 = vmatpush.msra.mxu0 0.0
        %831 = vmatpush.msra.mxu0 0.0
        %832 = vmatpush.msra.mxu0 0.0
        %833 = vmatpush.msra.mxu0 0.0
        %834 = vmatpush.msra.mxu0 0.0
        %835 = vmatpush.msra.mxu0 0.0
        %836 = vmatpush.msra.mxu0 0.0
        %837 = vmatpush.msra.mxu0 0.0
        %838 = vmatpush.msra.mxu0 %v821
        %839 = vmatmul.f32.gmra.mxu0 %v491
        %v840 = vpop.f32.mrf.mxu0
        %v841 = vadd.f32 %v790, %v840
        %842 = vmatmul.f32.gmra.mxu0 %v494
        %v843 = vpop.f32.mrf.mxu0
        %844 = vmatmul.f32.gmra.mxu0 %v497
        %v845 = vpop.f32.mrf.mxu0
        %v846 = vadd.f32 %v795, %v845
        %847 = vmatmul.f32.gmra.mxu0 %v500
        %v848 = vpop.f32.mrf.mxu0
        %v849 = vadd.f32 %v798, %v848
        %850 = vmatmul.f32.gmra.mxu0 %v503
        %v851 = vpop.f32.mrf.mxu0
        %v852 = vadd.f32 %v801, %v851
        %853 = vmatmul.f32.gmra.mxu0 %v506
        %v854 = vpop.f32.mrf.mxu0
        %855 = vmatmul.f32.gmra.mxu0 %v509
        %v856 = vpop.f32.mrf.mxu0
        %v857 = vadd.f32 %v806, %v856
        %858 = vmatmul.f32.gmra.mxu0 %v512
        %v859 = vpop.f32.mrf.mxu0
        %v860 = vadd.f32 %v809, %v859
        %861 = vdwg.mxu0
        %v863 = vsel %vm555, %v841, 0
        %865 = vmatpush.msra.mxu0 0.0
        %866 = vmatpush.msra.mxu0 0.0
        %867 = vmatpush.msra.mxu0 0.0
        %868 = vmatpush.msra.mxu0 0.0
        %869 = vmatpush.msra.mxu0 0.0
        %870 = vmatpush.msra.mxu0 0.0
        %871 = vmatpush.msra.mxu0 0.0
        %872 = vmatpush.msra.mxu0 0.0
        %873 = vmatpush.msra.mxu0 0.0
        %874 = vmatpush.msra.mxu0 0.0
        %875 = vmatpush.msra.mxu0 0.0
        %876 = vmatpush.msra.mxu0 0.0
        %877 = vmatpush.msra.mxu0 0.0
        %878 = vmatpush.msra.mxu0 0.0
        %879 = vmatpush.msra.mxu0 %v385
        %880 = vmatpush.msra.mxu0 %v384
        %881 = vmatmul.f32.gmra.mxu0 %v863
        %v882 = vpop.f32.mrf.mxu0
        %v883 = vadd.f32 0.0, %v882
        %884 = vdwg.mxu0
        %v885 = vadd.f32 %v582, %v883
        %v887 = vsel %vm555, %v846, 0
        %889 = vmatpush.msra.mxu0 0.0
        %890 = vmatpush.msra.mxu0 0.0
        %891 = vmatpush.msra.mxu0 0.0
        %892 = vmatpush.msra.mxu0 0.0
        %893 = vmatpush.msra.mxu0 0.0
        %894 = vmatpush.msra.mxu0 0.0
        %895 = vmatpush.msra.mxu0 0.0
        %896 = vmatpush.msra.mxu0 0.0
        %897 = vmatpush.msra.mxu0 0.0
        %898 = vmatpush.msra.mxu0 0.0
        %899 = vmatpush.msra.mxu0 0.0
        %900 = vmatpush.msra.mxu0 0.0
        %901 = vmatpush.msra.mxu0 0.0
        %902 = vmatpush.msra.mxu0 0.0
        %903 = vmatpush.msra.mxu0 %v388
        %904 = vmatpush.msra.mxu0 %v387
        %905 = vmatmul.f32.gmra.mxu0 %v887
        %v906 = vpop.f32.mrf.mxu0
        %v907 = vadd.f32 0.0, %v906
        %908 = vdwg.mxu0
        %v909 = vadd.f32 %v885, %v907
        %v911 = vsel %vm555, %v849, 0
        %913 = vmatpush.msra.mxu0 0.0
        %914 = vmatpush.msra.mxu0 0.0
        %915 = vmatpush.msra.mxu0 0.0
        %916 = vmatpush.msra.mxu0 0.0
        %917 = vmatpush.msra.mxu0 0.0
        %918 = vmatpush.msra.mxu0 0.0
        %919 = vmatpush.msra.mxu0 0.0
        %920 = vmatpush.msra.mxu0 0.0
        %921 = vmatpush.msra.mxu0 0.0
        %922 = vmatpush.msra.mxu0 0.0
        %923 = vmatpush.msra.mxu0 0.0
        %924 = vmatpush.msra.mxu0 0.0
        %925 = vmatpush.msra.mxu0 0.0
        %926 = vmatpush.msra.mxu0 0.0
        %927 = vmatpush.msra.mxu0 %v391
        %928 = vmatpush.msra.mxu0 %v390
        %929 = vmatmul.f32.gmra.mxu0 %v911
        %v930 = vpop.f32.mrf.mxu0
        %v931 = vadd.f32 0.0, %v930
        %932 = vdwg.mxu0
        %v933 = vadd.f32 %v909, %v931
        %v935 = vrot.slane %v933, 1
        %v936 = vrot.slane %v933, 2
        %v937 = vrot.slane %v933, 3
        %v938 = vrot.slane %v933, 4
        %v939 = vrot.slane %v933, 5
        %v940 = vrot.slane %v933, 6
        %v941 = vrot.slane %v933, 7
        %949 = vst.msk [vmem:[%s365 + $0x2] sm:$0x1] %vm648, %v933
        %950 = vst.msk [vmem:[%s365 + $0xa] sm:$0x1] %vm648, %v935
        %951 = vst.msk [vmem:[%s365 + $0x12] sm:$0x1] %vm648, %v936
        %952 = vst.msk [vmem:[%s365 + $0x1a] sm:$0x1] %vm648, %v937
        %953 = vst.msk [vmem:[%s365 + $0x22] sm:$0x1] %vm648, %v938
        %954 = vst.msk [vmem:[%s365 + $0x2a] sm:$0x1] %vm648, %v939
        %955 = vst.msk [vmem:[%s365 + $0x32] sm:$0x1] %vm648, %v940
        %956 = vst.msk [vmem:[%s365 + $0x3a] sm:$0x1] %vm648, %v941
        %v958 = vsel %vm555, %v852, 0
        %960 = vmatpush.msra.mxu0 0.0
        %961 = vmatpush.msra.mxu0 0.0
        %962 = vmatpush.msra.mxu0 0.0
        %963 = vmatpush.msra.mxu0 0.0
        %964 = vmatpush.msra.mxu0 0.0
        %965 = vmatpush.msra.mxu0 0.0
        %966 = vmatpush.msra.mxu0 0.0
        %967 = vmatpush.msra.mxu0 0.0
        %968 = vmatpush.msra.mxu0 0.0
        %969 = vmatpush.msra.mxu0 0.0
        %970 = vmatpush.msra.mxu0 0.0
        %971 = vmatpush.msra.mxu0 0.0
        %972 = vmatpush.msra.mxu0 0.0
        %973 = vmatpush.msra.mxu0 0.0
        %974 = vmatpush.msra.mxu0 %v385
        %975 = vmatpush.msra.mxu0 %v384
        %976 = vmatmul.f32.gmra.mxu0 %v958
        %v977 = vpop.f32.mrf.mxu0
        %v978 = vadd.f32 0.0, %v977
        %979 = vdwg.mxu0
        %v980 = vadd.f32 %v582, %v978
        %v982 = vsel %vm555, %v857, 0
        %984 = vmatpush.msra.mxu0 0.0
        %985 = vmatpush.msra.mxu0 0.0
        %986 = vmatpush.msra.mxu0 0.0
        %987 = vmatpush.msra.mxu0 0.0
        %988 = vmatpush.msra.mxu0 0.0
        %989 = vmatpush.msra.mxu0 0.0
        %990 = vmatpush.msra.mxu0 0.0
        %991 = vmatpush.msra.mxu0 0.0
        %992 = vmatpush.msra.mxu0 0.0
        %993 = vmatpush.msra.mxu0 0.0
        %994 = vmatpush.msra.mxu0 0.0
        %995 = vmatpush.msra.mxu0 0.0
        %996 = vmatpush.msra.mxu0 0.0
        %997 = vmatpush.msra.mxu0 0.0
        %998 = vmatpush.msra.mxu0 %v388
        %999 = vmatpush.msra.mxu0 %v387
        %1000 = vmatmul.f32.gmra.mxu0 %v982
        %v1001 = vpop.f32.mrf.mxu0
        %v1002 = vadd.f32 0.0, %v1001
        %1003 = vdwg.mxu0
        %v1004 = vadd.f32 %v980, %v1002
        %v1006 = vsel %vm555, %v860, 0
        %1008 = vmatpush.msra.mxu0 0.0
        %1009 = vmatpush.msra.mxu0 0.0
        %1010 = vmatpush.msra.mxu0 0.0
        %1011 = vmatpush.msra.mxu0 0.0
        %1012 = vmatpush.msra.mxu0 0.0
        %1013 = vmatpush.msra.mxu0 0.0
        %1014 = vmatpush.msra.mxu0 0.0
        %1015 = vmatpush.msra.mxu0 0.0
        %1016 = vmatpush.msra.mxu0 0.0
        %1017 = vmatpush.msra.mxu0 0.0
        %1018 = vmatpush.msra.mxu0 0.0
        %1019 = vmatpush.msra.mxu0 0.0
        %1020 = vmatpush.msra.mxu0 0.0
        %1021 = vmatpush.msra.mxu0 0.0
        %1022 = vmatpush.msra.mxu0 %v391
        %1023 = vmatpush.msra.mxu0 %v390
        %1024 = vmatmul.f32.gmra.mxu0 %v1006
        %v1025 = vpop.f32.mrf.mxu0
        %v1026 = vadd.f32 0.0, %v1025
        %1027 = vdwg.mxu0
        %v1028 = vadd.f32 %v1004, %v1026
        %v1030 = vrot.slane %v1028, 1
        %v1031 = vrot.slane %v1028, 2
        %v1032 = vrot.slane %v1028, 3
        %v1033 = vrot.slane %v1028, 4
        %v1034 = vrot.slane %v1028, 5
        %v1035 = vrot.slane %v1028, 6
        %v1036 = vrot.slane %v1028, 7
        %1044 = vst.msk [vmem:[%s365 + $0x3] sm:$0x1] %vm648, %v1028
        %1045 = vst.msk [vmem:[%s365 + $0xb] sm:$0x1] %vm648, %v1030
        %1046 = vst.msk [vmem:[%s365 + $0x13] sm:$0x1] %vm648, %v1031
        %1047 = vst.msk [vmem:[%s365 + $0x1b] sm:$0x1] %vm648, %v1032
        %1048 = vst.msk [vmem:[%s365 + $0x23] sm:$0x1] %vm648, %v1033
        %1049 = vst.msk [vmem:[%s365 + $0x2b] sm:$0x1] %vm648, %v1034
        %1050 = vst.msk [vmem:[%s365 + $0x33] sm:$0x1] %vm648, %v1035
        %1051 = vst.msk [vmem:[%s365 + $0x3b] sm:$0x1] %vm648, %v1036
        %v1052 = vld [vmem:[%s330 + $0x2] sm:$0x1]
        %v1053 = vld [vmem:[%s330 + $0x6] sm:$0x1]
        %v1054 = vld [vmem:[%s330 + $0xa] sm:$0x1]
        %v1055 = vld [vmem:[%s330 + $0xe] sm:$0x1]
        %v1056 = vld [vmem:[%s330 + $0x3] sm:$0x1]
        %v1057 = vld [vmem:[%s330 + $0x7] sm:$0x1]
        %v1058 = vld [vmem:[%s330 + $0xb] sm:$0x1]
        %v1059 = vld [vmem:[%s330 + $0xf] sm:$0x1]
        %v1064 = vrot.slane %v1057, 7
        %v1065 = vsel %vm405, %v1064, %v1056
        %v1066 = vrot.slane %v1058, 6
        %v1067 = vsel %vm408, %v1066, %v1065
        %v1068 = vrot.slane %v1059, 5
        %v1069 = vsel %vm411, %v1068, %v1067
        %v1070 = vsel %vm438, %v1069, 0
        %1072 = vmatpush.msra.mxu0 0.0
        %1073 = vmatpush.msra.mxu0 0.0
        %1074 = vmatpush.msra.mxu0 0.0
        %1075 = vmatpush.msra.mxu0 0.0
        %1076 = vmatpush.msra.mxu0 0.0
        %1077 = vmatpush.msra.mxu0 0.0
        %1078 = vmatpush.msra.mxu0 0.0
        %1079 = vmatpush.msra.mxu0 0.0
        %1080 = vmatpush.msra.mxu0 0.0
        %1081 = vmatpush.msra.mxu0 0.0
        %1082 = vmatpush.msra.mxu0 0.0
        %1083 = vmatpush.msra.mxu0 0.0
        %1084 = vmatpush.msra.mxu0 0.0
        %1085 = vmatpush.msra.mxu0 0.0
        %1086 = vmatpush.msra.mxu0 0.0
        %1087 = vmatpush.msra.mxu0 %v1070
        %1088 = vmatmul.f32.gmra.mxu0 %v415
        %v1089 = vpop.f32.mrf.mxu0
        %v1090 = vadd.f32 0.0, %v1089
        %1091 = vmatmul.f32.gmra.mxu0 %v418
        %v1092 = vpop.f32.mrf.mxu0
        %1093 = vmatmul.f32.gmra.mxu0 %v421
        %v1094 = vpop.f32.mrf.mxu0
        %v1095 = vadd.f32 0.0, %v1094
        %1096 = vmatmul.f32.gmra.mxu0 %v424
        %v1097 = vpop.f32.mrf.mxu0
        %v1098 = vadd.f32 0.0, %v1097
        %1099 = vmatmul.f32.gmra.mxu0 %v427
        %v1100 = vpop.f32.mrf.mxu0
        %v1101 = vadd.f32 0.0, %v1100
        %1102 = vmatmul.f32.gmra.mxu0 %v430
        %v1103 = vpop.f32.mrf.mxu0
        %1104 = vmatmul.f32.gmra.mxu0 %v433
        %v1105 = vpop.f32.mrf.mxu0
        %v1106 = vadd.f32 0.0, %v1105
        %1107 = vmatmul.f32.gmra.mxu0 %v436
        %v1108 = vpop.f32.mrf.mxu0
        %v1109 = vadd.f32 0.0, %v1108
        %1110 = vdwg.mxu0
        %v1115 = vrot.slane %v1053, 7
        %v1116 = vsel %vm405, %v1115, %v1052
        %v1117 = vrot.slane %v1054, 6
        %v1118 = vsel %vm408, %v1117, %v1116
        %v1119 = vrot.slane %v1055, 5
        %v1120 = vsel %vm411, %v1119, %v1118
        %v1121 = vsel %vm438, %v1120, 0
        %1123 = vmatpush.msra.mxu0 0.0
        %1124 = vmatpush.msra.mxu0 0.0
        %1125 = vmatpush.msra.mxu0 0.0
        %1126 = vmatpush.msra.mxu0 0.0
        %1127 = vmatpush.msra.mxu0 0.0
        %1128 = vmatpush.msra.mxu0 0.0
        %1129 = vmatpush.msra.mxu0 0.0
        %1130 = vmatpush.msra.mxu0 0.0
        %1131 = vmatpush.msra.mxu0 0.0
        %1132 = vmatpush.msra.mxu0 0.0
        %1133 = vmatpush.msra.mxu0 0.0
        %1134 = vmatpush.msra.mxu0 0.0
        %1135 = vmatpush.msra.mxu0 0.0
        %1136 = vmatpush.msra.mxu0 0.0
        %1137 = vmatpush.msra.mxu0 0.0
        %1138 = vmatpush.msra.mxu0 %v1121
        %1139 = vmatmul.f32.gmra.mxu0 %v491
        %v1140 = vpop.f32.mrf.mxu0
        %v1141 = vadd.f32 %v1090, %v1140
        %1142 = vmatmul.f32.gmra.mxu0 %v494
        %v1143 = vpop.f32.mrf.mxu0
        %1144 = vmatmul.f32.gmra.mxu0 %v497
        %v1145 = vpop.f32.mrf.mxu0
        %v1146 = vadd.f32 %v1095, %v1145
        %1147 = vmatmul.f32.gmra.mxu0 %v500
        %v1148 = vpop.f32.mrf.mxu0
        %v1149 = vadd.f32 %v1098, %v1148
        %1150 = vmatmul.f32.gmra.mxu0 %v503
        %v1151 = vpop.f32.mrf.mxu0
        %v1152 = vadd.f32 %v1101, %v1151
        %1153 = vmatmul.f32.gmra.mxu0 %v506
        %v1154 = vpop.f32.mrf.mxu0
        %1155 = vmatmul.f32.gmra.mxu0 %v509
        %v1156 = vpop.f32.mrf.mxu0
        %v1157 = vadd.f32 %v1106, %v1156
        %1158 = vmatmul.f32.gmra.mxu0 %v512
        %v1159 = vpop.f32.mrf.mxu0
        %v1160 = vadd.f32 %v1109, %v1159
        %1161 = vdwg.mxu0
        %v1163 = vsel %vm555, %v1141, 0
        %1165 = vmatpush.msra.mxu0 0.0
        %1166 = vmatpush.msra.mxu0 0.0
        %1167 = vmatpush.msra.mxu0 0.0
        %1168 = vmatpush.msra.mxu0 0.0
        %1169 = vmatpush.msra.mxu0 0.0
        %1170 = vmatpush.msra.mxu0 0.0
        %1171 = vmatpush.msra.mxu0 0.0
        %1172 = vmatpush.msra.mxu0 0.0
        %1173 = vmatpush.msra.mxu0 0.0
        %1174 = vmatpush.msra.mxu0 0.0
        %1175 = vmatpush.msra.mxu0 0.0
        %1176 = vmatpush.msra.mxu0 0.0
        %1177 = vmatpush.msra.mxu0 0.0
        %1178 = vmatpush.msra.mxu0 0.0
        %1179 = vmatpush.msra.mxu0 %v385
        %1180 = vmatpush.msra.mxu0 %v384
        %1181 = vmatmul.f32.gmra.mxu0 %v1163
        %v1182 = vpop.f32.mrf.mxu0
        %v1183 = vadd.f32 0.0, %v1182
        %1184 = vdwg.mxu0
        %v1185 = vadd.f32 %v582, %v1183
        %v1187 = vsel %vm555, %v1146, 0
        %1189 = vmatpush.msra.mxu0 0.0
        %1190 = vmatpush.msra.mxu0 0.0
        %1191 = vmatpush.msra.mxu0 0.0
        %1192 = vmatpush.msra.mxu0 0.0
        %1193 = vmatpush.msra.mxu0 0.0
        %1194 = vmatpush.msra.mxu0 0.0
        %1195 = vmatpush.msra.mxu0 0.0
        %1196 = vmatpush.msra.mxu0 0.0
        %1197 = vmatpush.msra.mxu0 0.0
        %1198 = vmatpush.msra.mxu0 0.0
        %1199 = vmatpush.msra.mxu0 0.0
        %1200 = vmatpush.msra.mxu0 0.0
        %1201 = vmatpush.msra.mxu0 0.0
        %1202 = vmatpush.msra.mxu0 0.0
        %1203 = vmatpush.msra.mxu0 %v388
        %1204 = vmatpush.msra.mxu0 %v387
        %1205 = vmatmul.f32.gmra.mxu0 %v1187
        %v1206 = vpop.f32.mrf.mxu0
        %v1207 = vadd.f32 0.0, %v1206
        %1208 = vdwg.mxu0
        %v1209 = vadd.f32 %v1185, %v1207
        %v1211 = vsel %vm555, %v1149, 0
        %1213 = vmatpush.msra.mxu0 0.0
        %1214 = vmatpush.msra.mxu0 0.0
        %1215 = vmatpush.msra.mxu0 0.0
        %1216 = vmatpush.msra.mxu0 0.0
        %1217 = vmatpush.msra.mxu0 0.0
        %1218 = vmatpush.msra.mxu0 0.0
        %1219 = vmatpush.msra.mxu0 0.0
        %1220 = vmatpush.msra.mxu0 0.0
        %1221 = vmatpush.msra.mxu0 0.0
        %1222 = vmatpush.msra.mxu0 0.0
        %1223 = vmatpush.msra.mxu0 0.0
        %1224 = vmatpush.msra.mxu0 0.0
        %1225 = vmatpush.msra.mxu0 0.0
        %1226 = vmatpush.msra.mxu0 0.0
        %1227 = vmatpush.msra.mxu0 %v391
        %1228 = vmatpush.msra.mxu0 %v390
        %1229 = vmatmul.f32.gmra.mxu0 %v1211
        %v1230 = vpop.f32.mrf.mxu0
        %v1231 = vadd.f32 0.0, %v1230
        %1232 = vdwg.mxu0
        %v1233 = vadd.f32 %v1209, %v1231
        %v1235 = vrot.slane %v1233, 1
        %v1236 = vrot.slane %v1233, 2
        %v1237 = vrot.slane %v1233, 3
        %v1238 = vrot.slane %v1233, 4
        %v1239 = vrot.slane %v1233, 5
        %v1240 = vrot.slane %v1233, 6
        %v1241 = vrot.slane %v1233, 7
        %1249 = vst.msk [vmem:[%s365 + $0x4] sm:$0x1] %vm648, %v1233
        %1250 = vst.msk [vmem:[%s365 + $0xc] sm:$0x1] %vm648, %v1235
        %1251 = vst.msk [vmem:[%s365 + $0x14] sm:$0x1] %vm648, %v1236
        %1252 = vst.msk [vmem:[%s365 + $0x1c] sm:$0x1] %vm648, %v1237
        %1253 = vst.msk [vmem:[%s365 + $0x24] sm:$0x1] %vm648, %v1238
        %1254 = vst.msk [vmem:[%s365 + $0x2c] sm:$0x1] %vm648, %v1239
        %1255 = vst.msk [vmem:[%s365 + $0x34] sm:$0x1] %vm648, %v1240
        %1256 = vst.msk [vmem:[%s365 + $0x3c] sm:$0x1] %vm648, %v1241
        %v1258 = vsel %vm555, %v1152, 0
        %1260 = vmatpush.msra.mxu0 0.0
        %1261 = vmatpush.msra.mxu0 0.0
        %1262 = vmatpush.msra.mxu0 0.0
        %1263 = vmatpush.msra.mxu0 0.0
        %1264 = vmatpush.msra.mxu0 0.0
        %1265 = vmatpush.msra.mxu0 0.0
        %1266 = vmatpush.msra.mxu0 0.0
        %1267 = vmatpush.msra.mxu0 0.0
        %1268 = vmatpush.msra.mxu0 0.0
        %1269 = vmatpush.msra.mxu0 0.0
        %1270 = vmatpush.msra.mxu0 0.0
        %1271 = vmatpush.msra.mxu0 0.0
        %1272 = vmatpush.msra.mxu0 0.0
        %1273 = vmatpush.msra.mxu0 0.0
        %1274 = vmatpush.msra.mxu0 %v385
        %1275 = vmatpush.msra.mxu0 %v384
        %1276 = vmatmul.f32.gmra.mxu0 %v1258
        %v1277 = vpop.f32.mrf.mxu0
        %v1278 = vadd.f32 0.0, %v1277
        %1279 = vdwg.mxu0
        %v1280 = vadd.f32 %v582, %v1278
        %v1282 = vsel %vm555, %v1157, 0
        %1284 = vmatpush.msra.mxu0 0.0
        %1285 = vmatpush.msra.mxu0 0.0
        %1286 = vmatpush.msra.mxu0 0.0
        %1287 = vmatpush.msra.mxu0 0.0
        %1288 = vmatpush.msra.mxu0 0.0
        %1289 = vmatpush.msra.mxu0 0.0
        %1290 = vmatpush.msra.mxu0 0.0
        %1291 = vmatpush.msra.mxu0 0.0
        %1292 = vmatpush.msra.mxu0 0.0
        %1293 = vmatpush.msra.mxu0 0.0
        %1294 = vmatpush.msra.mxu0 0.0
        %1295 = vmatpush.msra.mxu0 0.0
        %1296 = vmatpush.msra.mxu0 0.0
        %1297 = vmatpush.msra.mxu0 0.0
        %1298 = vmatpush.msra.mxu0 %v388
        %1299 = vmatpush.msra.mxu0 %v387
        %1300 = vmatmul.f32.gmra.mxu0 %v1282
        %v1301 = vpop.f32.mrf.mxu0
        %v1302 = vadd.f32 0.0, %v1301
        %1303 = vdwg.mxu0
        %v1304 = vadd.f32 %v1280, %v1302
        %v1306 = vsel %vm555, %v1160, 0
        %1308 = vmatpush.msra.mxu0 0.0
        %1309 = vmatpush.msra.mxu0 0.0
        %1310 = vmatpush.msra.mxu0 0.0
        %1311 = vmatpush.msra.mxu0 0.0
        %1312 = vmatpush.msra.mxu0 0.0
        %1313 = vmatpush.msra.mxu0 0.0
        %1314 = vmatpush.msra.mxu0 0.0
        %1315 = vmatpush.msra.mxu0 0.0
        %1316 = vmatpush.msra.mxu0 0.0
        %1317 = vmatpush.msra.mxu0 0.0
        %1318 = vmatpush.msra.mxu0 0.0
        %1319 = vmatpush.msra.mxu0 0.0
        %1320 = vmatpush.msra.mxu0 0.0
        %1321 = vmatpush.msra.mxu0 0.0
        %1322 = vmatpush.msra.mxu0 %v391
        %1323 = vmatpush.msra.mxu0 %v390
        %1324 = vmatmul.f32.gmra.mxu0 %v1306
        %v1325 = vpop.f32.mrf.mxu0
        %v1326 = vadd.f32 0.0, %v1325
        %1327 = vdwg.mxu0
        %v1328 = vadd.f32 %v1304, %v1326
        %v1330 = vrot.slane %v1328, 1
        %v1331 = vrot.slane %v1328, 2
        %v1332 = vrot.slane %v1328, 3
        %v1333 = vrot.slane %v1328, 4
        %v1334 = vrot.slane %v1328, 5
        %v1335 = vrot.slane %v1328, 6
        %v1336 = vrot.slane %v1328, 7
        %1344 = vst.msk [vmem:[%s365 + $0x5] sm:$0x1] %vm648, %v1328
        %1345 = vst.msk [vmem:[%s365 + $0xd] sm:$0x1] %vm648, %v1330
        %1346 = vst.msk [vmem:[%s365 + $0x15] sm:$0x1] %vm648, %v1331
        %1347 = vst.msk [vmem:[%s365 + $0x1d] sm:$0x1] %vm648, %v1332
        %1348 = vst.msk [vmem:[%s365 + $0x25] sm:$0x1] %vm648, %v1333
        %1349 = vst.msk [vmem:[%s365 + $0x2d] sm:$0x1] %vm648, %v1334
        %1350 = vst.msk [vmem:[%s365 + $0x35] sm:$0x1] %vm648, %v1335
        %1351 = vst.msk [vmem:[%s365 + $0x3d] sm:$0x1] %vm648, %v1336
        %v1352 = vld [vmem:[%s330 + $0x3] sm:$0x1]
        %v1353 = vld [vmem:[%s330 + $0x7] sm:$0x1]
        %v1354 = vld [vmem:[%s330 + $0xb] sm:$0x1]
        %v1355 = vld [vmem:[%s330 + $0xf] sm:$0x1]
        %v1356 = vld [vmem:[%s337] sm:$0x1]
        %v1357 = vld [vmem:[%s337 + $0x1] sm:$0x1]
        %v1358 = vld [vmem:[%s337 + $0x2] sm:$0x1]
        %v1359 = vld [vmem:[%s337 + $0x3] sm:$0x1]
        %1364 = vst [vmem:[#allocation1] ss:$9 sm:$0xff] %v1356
        %s1365 = scalar_lea.vmem [#allocation1], 1
        %1366 = vst [vmem:[%s1365] ss:$9 sm:$0xff] %v1357
        %s1367 = scalar_lea.vmem [#allocation1], 2
        %1368 = vst [vmem:[%s1367] ss:$9 sm:$0xff] %v1358
        %s1369 = scalar_lea.vmem [#allocation1], 3
        %1370 = vst [vmem:[%s1369] ss:$9 sm:$0xff] %v1359
        %v1371 = vld [vmem:[#allocation1] sm:$0xff]
        %v1372 = vsel %vm438, %v1371, 0
        %1374 = vmatpush.msra.mxu0 0.0
        %1375 = vmatpush.msra.mxu0 0.0
        %1376 = vmatpush.msra.mxu0 0.0
        %1377 = vmatpush.msra.mxu0 0.0
        %1378 = vmatpush.msra.mxu0 0.0
        %1379 = vmatpush.msra.mxu0 0.0
        %1380 = vmatpush.msra.mxu0 0.0
        %1381 = vmatpush.msra.mxu0 0.0
        %1382 = vmatpush.msra.mxu0 0.0
        %1383 = vmatpush.msra.mxu0 0.0
        %1384 = vmatpush.msra.mxu0 0.0
        %1385 = vmatpush.msra.mxu0 0.0
        %1386 = vmatpush.msra.mxu0 0.0
        %1387 = vmatpush.msra.mxu0 0.0
        %1388 = vmatpush.msra.mxu0 0.0
        %1389 = vmatpush.msra.mxu0 %v1372
        %1390 = vmatmul.f32.gmra.mxu0 %v415
        %v1391 = vpop.f32.mrf.mxu0
        %v1392 = vadd.f32 0.0, %v1391
        %1393 = vmatmul.f32.gmra.mxu0 %v418
        %v1394 = vpop.f32.mrf.mxu0
        %1395 = vmatmul.f32.gmra.mxu0 %v421
        %v1396 = vpop.f32.mrf.mxu0
        %v1397 = vadd.f32 0.0, %v1396
        %1398 = vmatmul.f32.gmra.mxu0 %v424
        %v1399 = vpop.f32.mrf.mxu0
        %v1400 = vadd.f32 0.0, %v1399
        %1401 = vmatmul.f32.gmra.mxu0 %v427
        %v1402 = vpop.f32.mrf.mxu0
        %v1403 = vadd.f32 0.0, %v1402
        %1404 = vmatmul.f32.gmra.mxu0 %v430
        %v1405 = vpop.f32.mrf.mxu0
        %1406 = vmatmul.f32.gmra.mxu0 %v433
        %v1407 = vpop.f32.mrf.mxu0
        %v1408 = vadd.f32 0.0, %v1407
        %1409 = vmatmul.f32.gmra.mxu0 %v436
        %v1410 = vpop.f32.mrf.mxu0
        %v1411 = vadd.f32 0.0, %v1410
        %1412 = vdwg.mxu0
        %v1417 = vrot.slane %v1353, 7
        %v1418 = vsel %vm405, %v1417, %v1352
        %v1419 = vrot.slane %v1354, 6
        %v1420 = vsel %vm408, %v1419, %v1418
        %v1421 = vrot.slane %v1355, 5
        %v1422 = vsel %vm411, %v1421, %v1420
        %v1423 = vsel %vm438, %v1422, 0
        %1425 = vmatpush.msra.mxu0 0.0
        %1426 = vmatpush.msra.mxu0 0.0
        %1427 = vmatpush.msra.mxu0 0.0
        %1428 = vmatpush.msra.mxu0 0.0
        %1429 = vmatpush.msra.mxu0 0.0
        %1430 = vmatpush.msra.mxu0 0.0
        %1431 = vmatpush.msra.mxu0 0.0
        %1432 = vmatpush.msra.mxu0 0.0
        %1433 = vmatpush.msra.mxu0 0.0
        %1434 = vmatpush.msra.mxu0 0.0
        %1435 = vmatpush.msra.mxu0 0.0
        %1436 = vmatpush.msra.mxu0 0.0
        %1437 = vmatpush.msra.mxu0 0.0
        %1438 = vmatpush.msra.mxu0 0.0
        %1439 = vmatpush.msra.mxu0 0.0
        %1440 = vmatpush.msra.mxu0 %v1423
        %1441 = vmatmul.f32.gmra.mxu0 %v491
        %v1442 = vpop.f32.mrf.mxu0
        %v1443 = vadd.f32 %v1392, %v1442
        %1444 = vmatmul.f32.gmra.mxu0 %v494
        %v1445 = vpop.f32.mrf.mxu0
        %1446 = vmatmul.f32.gmra.mxu0 %v497
        %v1447 = vpop.f32.mrf.mxu0
        %v1448 = vadd.f32 %v1397, %v1447
        %1449 = vmatmul.f32.gmra.mxu0 %v500
        %v1450 = vpop.f32.mrf.mxu0
        %v1451 = vadd.f32 %v1400, %v1450
        %1452 = vmatmul.f32.gmra.mxu0 %v503
        %v1453 = vpop.f32.mrf.mxu0
        %v1454 = vadd.f32 %v1403, %v1453
        %1455 = vmatmul.f32.gmra.mxu0 %v506
        %v1456 = vpop.f32.mrf.mxu0
        %1457 = vmatmul.f32.gmra.mxu0 %v509
        %v1458 = vpop.f32.mrf.mxu0
        %v1459 = vadd.f32 %v1408, %v1458
        %1460 = vmatmul.f32.gmra.mxu0 %v512
        %v1461 = vpop.f32.mrf.mxu0
        %v1462 = vadd.f32 %v1411, %v1461
        %1463 = vdwg.mxu0
        %v1465 = vsel %vm555, %v1443, 0
        %1467 = vmatpush.msra.mxu0 0.0
        %1468 = vmatpush.msra.mxu0 0.0
        %1469 = vmatpush.msra.mxu0 0.0
        %1470 = vmatpush.msra.mxu0 0.0
        %1471 = vmatpush.msra.mxu0 0.0
        %1472 = vmatpush.msra.mxu0 0.0
        %1473 = vmatpush.msra.mxu0 0.0
        %1474 = vmatpush.msra.mxu0 0.0
        %1475 = vmatpush.msra.mxu0 0.0
        %1476 = vmatpush.msra.mxu0 0.0
        %1477 = vmatpush.msra.mxu0 0.0
        %1478 = vmatpush.msra.mxu0 0.0
        %1479 = vmatpush.msra.mxu0 0.0
        %1480 = vmatpush.msra.mxu0 0.0
        %1481 = vmatpush.msra.mxu0 %v385
        %1482 = vmatpush.msra.mxu0 %v384
        %1483 = vmatmul.f32.gmra.mxu0 %v1465
        %v1484 = vpop.f32.mrf.mxu0
        %v1485 = vadd.f32 0.0, %v1484
        %1486 = vdwg.mxu0
        %v1487 = vadd.f32 %v582, %v1485
        %v1489 = vsel %vm555, %v1448, 0
        %1491 = vmatpush.msra.mxu0 0.0
        %1492 = vmatpush.msra.mxu0 0.0
        %1493 = vmatpush.msra.mxu0 0.0
        %1494 = vmatpush.msra.mxu0 0.0
        %1495 = vmatpush.msra.mxu0 0.0
        %1496 = vmatpush.msra.mxu0 0.0
        %1497 = vmatpush.msra.mxu0 0.0
        %1498 = vmatpush.msra.mxu0 0.0
        %1499 = vmatpush.msra.mxu0 0.0
        %1500 = vmatpush.msra.mxu0 0.0
        %1501 = vmatpush.msra.mxu0 0.0
        %1502 = vmatpush.msra.mxu0 0.0
        %1503 = vmatpush.msra.mxu0 0.0
        %1504 = vmatpush.msra.mxu0 0.0
        %1505 = vmatpush.msra.mxu0 %v388
        %1506 = vmatpush.msra.mxu0 %v387
        %1507 = vmatmul.f32.gmra.mxu0 %v1489
        %v1508 = vpop.f32.mrf.mxu0
        %v1509 = vadd.f32 0.0, %v1508
        %1510 = vdwg.mxu0
        %v1511 = vadd.f32 %v1487, %v1509
        %v1513 = vsel %vm555, %v1451, 0
        %1515 = vmatpush.msra.mxu0 0.0
        %1516 = vmatpush.msra.mxu0 0.0
        %1517 = vmatpush.msra.mxu0 0.0
        %1518 = vmatpush.msra.mxu0 0.0
        %1519 = vmatpush.msra.mxu0 0.0
        %1520 = vmatpush.msra.mxu0 0.0
        %1521 = vmatpush.msra.mxu0 0.0
        %1522 = vmatpush.msra.mxu0 0.0
        %1523 = vmatpush.msra.mxu0 0.0
        %1524 = vmatpush.msra.mxu0 0.0
        %1525 = vmatpush.msra.mxu0 0.0
        %1526 = vmatpush.msra.mxu0 0.0
        %1527 = vmatpush.msra.mxu0 0.0
        %1528 = vmatpush.msra.mxu0 0.0
        %1529 = vmatpush.msra.mxu0 %v391
        %1530 = vmatpush.msra.mxu0 %v390
        %1531 = vmatmul.f32.gmra.mxu0 %v1513
        %v1532 = vpop.f32.mrf.mxu0
        %v1533 = vadd.f32 0.0, %v1532
        %1534 = vdwg.mxu0
        %v1535 = vadd.f32 %v1511, %v1533
        %v1537 = vrot.slane %v1535, 1
        %v1538 = vrot.slane %v1535, 2
        %v1539 = vrot.slane %v1535, 3
        %v1540 = vrot.slane %v1535, 4
        %v1541 = vrot.slane %v1535, 5
        %v1542 = vrot.slane %v1535, 6
        %v1543 = vrot.slane %v1535, 7
        %1551 = vst.msk [vmem:[%s365 + $0x6] sm:$0x1] %vm648, %v1535
        %1552 = vst.msk [vmem:[%s365 + $0xe] sm:$0x1] %vm648, %v1537
        %1553 = vst.msk [vmem:[%s365 + $0x16] sm:$0x1] %vm648, %v1538
        %1554 = vst.msk [vmem:[%s365 + $0x1e] sm:$0x1] %vm648, %v1539
        %1555 = vst.msk [vmem:[%s365 + $0x26] sm:$0x1] %vm648, %v1540
        %1556 = vst.msk [vmem:[%s365 + $0x2e] sm:$0x1] %vm648, %v1541
        %1557 = vst.msk [vmem:[%s365 + $0x36] sm:$0x1] %vm648, %v1542
        %1558 = vst.msk [vmem:[%s365 + $0x3e] sm:$0x1] %vm648, %v1543
        %v1560 = vsel %vm555, %v1454, 0
        %1562 = vmatpush.msra.mxu0 0.0
        %1563 = vmatpush.msra.mxu0 0.0
        %1564 = vmatpush.msra.mxu0 0.0
        %1565 = vmatpush.msra.mxu0 0.0
        %1566 = vmatpush.msra.mxu0 0.0
        %1567 = vmatpush.msra.mxu0 0.0
        %1568 = vmatpush.msra.mxu0 0.0
        %1569 = vmatpush.msra.mxu0 0.0
        %1570 = vmatpush.msra.mxu0 0.0
        %1571 = vmatpush.msra.mxu0 0.0
        %1572 = vmatpush.msra.mxu0 0.0
        %1573 = vmatpush.msra.mxu0 0.0
        %1574 = vmatpush.msra.mxu0 0.0
        %1575 = vmatpush.msra.mxu0 0.0
        %1576 = vmatpush.msra.mxu0 %v385
        %1577 = vmatpush.msra.mxu0 %v384
        %1578 = vmatmul.f32.gmra.mxu0 %v1560
        %v1579 = vpop.f32.mrf.mxu0
        %v1580 = vadd.f32 0.0, %v1579
        %1581 = vdwg.mxu0
        %v1582 = vadd.f32 %v582, %v1580
        %v1584 = vsel %vm555, %v1459, 0
        %1586 = vmatpush.msra.mxu0 0.0
        %1587 = vmatpush.msra.mxu0 0.0
        %1588 = vmatpush.msra.mxu0 0.0
        %1589 = vmatpush.msra.mxu0 0.0
        %1590 = vmatpush.msra.mxu0 0.0
        %1591 = vmatpush.msra.mxu0 0.0
        %1592 = vmatpush.msra.mxu0 0.0
        %1593 = vmatpush.msra.mxu0 0.0
        %1594 = vmatpush.msra.mxu0 0.0
        %1595 = vmatpush.msra.mxu0 0.0
        %1596 = vmatpush.msra.mxu0 0.0
        %1597 = vmatpush.msra.mxu0 0.0
        %1598 = vmatpush.msra.mxu0 0.0
        %1599 = vmatpush.msra.mxu0 0.0
        %1600 = vmatpush.msra.mxu0 %v388
        %1601 = vmatpush.msra.mxu0 %v387
        %1602 = vmatmul.f32.gmra.mxu0 %v1584
        %v1603 = vpop.f32.mrf.mxu0
        %v1604 = vadd.f32 0.0, %v1603
        %1605 = vdwg.mxu0
        %v1606 = vadd.f32 %v1582, %v1604
        %v1608 = vsel %vm555, %v1462, 0
        %1610 = vmatpush.msra.mxu0 0.0
        %1611 = vmatpush.msra.mxu0 0.0
        %1612 = vmatpush.msra.mxu0 0.0
        %1613 = vmatpush.msra.mxu0 0.0
        %1614 = vmatpush.msra.mxu0 0.0
        %1615 = vmatpush.msra.mxu0 0.0
        %1616 = vmatpush.msra.mxu0 0.0
        %1617 = vmatpush.msra.mxu0 0.0
        %1618 = vmatpush.msra.mxu0 0.0
        %1619 = vmatpush.msra.mxu0 0.0
        %1620 = vmatpush.msra.mxu0 0.0
        %1621 = vmatpush.msra.mxu0 0.0
        %1622 = vmatpush.msra.mxu0 0.0
        %1623 = vmatpush.msra.mxu0 0.0
        %1624 = vmatpush.msra.mxu0 %v391
        %1625 = vmatpush.msra.mxu0 %v390
        %1626 = vmatmul.f32.gmra.mxu0 %v1608
        %v1627 = vpop.f32.mrf.mxu0
        %v1628 = vadd.f32 0.0, %v1627
        %1629 = vdwg.mxu0
        %v1630 = vadd.f32 %v1606, %v1628
        %v1632 = vrot.slane %v1630, 1
        %v1633 = vrot.slane %v1630, 2
        %v1634 = vrot.slane %v1630, 3
        %v1635 = vrot.slane %v1630, 4
        %v1636 = vrot.slane %v1630, 5
        %v1637 = vrot.slane %v1630, 6
        %v1638 = vrot.slane %v1630, 7
        %1646 = vst.msk [vmem:[%s365 + $0x7] sm:$0x1] %vm648, %v1630
        %1647 = vst.msk [vmem:[%s365 + $0xf] sm:$0x1] %vm648, %v1632
        %1648 = vst.msk [vmem:[%s365 + $0x17] sm:$0x1] %vm648, %v1633
        %1649 = vst.msk [vmem:[%s365 + $0x1f] sm:$0x1] %vm648, %v1634
        %1650 = vst.msk [vmem:[%s365 + $0x27] sm:$0x1] %vm648, %v1635
        %1651 = vst.msk [vmem:[%s365 + $0x2f] sm:$0x1] %vm648, %v1636
        %1652 = vst.msk [vmem:[%s365 + $0x37] sm:$0x1] %vm648, %v1637
        %1653 = vst.msk [vmem:[%s365 + $0x3f] sm:$0x1] %vm648, %v1638
        %s1654 = sand.u32 %s160, 1
        %s1655 = scalar_lea.sflag [#allocation5], %s1654
        %s1656 = sand.u32 %s160, 1
        %s1657 = smul.addr %s1656, 64
        %s1658 = scalar_lea.vmem [#allocation4], %s1657
        // Predicated region
        $region116: #{conv_transpose_block.1} parent=106 // pred_check
          %p1659 = pneg %p170
        $region117: #{conv_transpose_block.1} parent=106 // pred_check_branch
          %1661 = sbr.rel (%p1659) target = $region119
        $region118: #{conv_transpose_block.1} parent=106 // pred_region
          %1663 = vsyncadd %s1655, 0
          %s1664 = smul.addr %s23, 32
          %s1665 = sadd.s32 %s24, %s1664
          %s1666 = smul.addr %s1665, 8
          %s1667 = scalar_lea.hbm %s5, %s1666
          %s1668 = sshll.u32 %s1658, 4
          %s1669 = int_to_ptr.vmem [resolvable:$true] %s1668
          %s1670 = sshll.u32 %s1667, 4
          %s1671 = int_to_ptr.hbm [resolvable:$true] %s1670
          %1676 = dma.vmem_to_hbm [thread:$0]  %s1669, 1024, %s1671, %s1655, 128, 512, 8
        $region119: #{conv_transpose_block.1} parent=106 // pred_fallthru
          _
      $region107: #{conv_transpose_block.1} parent=5 // pred_fallthru
        _
      %p1677 = scmp.le.s32.totalorder 2, %s14
      // Predicated region
      $region120: #{conv_transpose_block.1} parent=5 // pred_check
        %p1678 = pneg %p1677
      $region121: #{conv_transpose_block.1} parent=5 // pred_check_branch
        %1680 = sbr.rel (%p1678) target = $region123
      $region122: #{conv_transpose_block.1} parent=5 // pred_region
        %s1681 = ssub.s32 %s14, 2
        // Predicated region
        $region124: #{conv_transpose_block.1} parent=122 // pred_check
          %p1682 = pneg %p176
        $region125: #{conv_transpose_block.1} parent=122 // pred_check_branch
          %1684 = sbr.rel (%p1682) target = $region127
        $region126: #{conv_transpose_block.1} parent=122 // pred_region
          %s1685 = sand.u32 %s161, 1
          %s1686 = scalar_lea.sflag [#allocation5], %s1685
          %s1687 = sand.u32 %s161, 1
          %s1688 = smul.addr %s1687, 64
          %s1689 = scalar_lea.vmem [#allocation4], %s1688
          %1691 = dma.done %s1686, 1024
        $region127: #{conv_transpose_block.1} parent=122 // pred_fallthru
          _
      $region123: #{conv_transpose_block.1} parent=5 // pred_fallthru
        _
    $region6: #{conv_transpose_block.1} parent=1 // loop_footer
      %s18 = sadd.s32 1, %s14
    $region7: #{conv_transpose_block.1} parent=1 // loop_footer_branch
      %13 = sbr.rel target = $region3
    $region8: #{conv_transpose_block.1} parent=1 // loop_exit
      _
    %1692 = vsyncpa [#allocation5], 1
    %s1693 = scalar_lea.sflag [#allocation5], 1
    %1694 = vsyncpa %s1693, 1

</llo_original>
